<compile_context>
chip_gen: v5e
topology: v5e:2x2
jax: 0.10.0
libtpu: 0.0.40
codegen_flags: <defaults>
</compile_context>

<pallas_src>
import functools

import jax
import jax.numpy as jnp
from jax.experimental import pallas as pl
from jax.experimental.pallas import tpu as pltpu

POOL = 2          # kernel_size == stride == 2 for both pooling layers
_CHUNK = 256      # lane chunk for the pair-isolating reshape (bounds relayout)
_SUBLANE = {1: 32, 2: 16, 4: 8}   # itemsize -> sublane packing


def _split_pool_kernel(x_ref, o_ref, *, C, homogeneous):
    """Pool one (TR, TL) tile of the row-flattened (B*C, L) input.

    x_ref: (TR, TL)   rows = flattened (batch, channel), lanes = sequence
    o_ref: (TR, TL // 2)

    Rows whose channel index is  < C//2  -> AvgPool1d(2, 2)
    Rows whose channel index is >= C//2  -> MaxPool1d(2, 2)
    """
    TR, TL = x_ref.shape
    W = _CHUNK if TL % _CHUNK == 0 else TL
    Wh = W // POOL
    n_chunks = TL // W

    row0 = pl.program_id(0) * TR

    def offs(c):
        if isinstance(c, int):                 # statically unrolled chunk
            return c * W, c * Wh
        return (pl.multiple_of(c * W, W),      # dynamic (pl.loop) chunk
                pl.multiple_of(c * Wh, Wh))

    def emit_avg(c):
        off, offh = offs(c)
        xw = x_ref[:, pl.ds(off, W)].astype(jnp.float32).reshape(TR, Wh, POOL)
        o_ref[:, pl.ds(offh, Wh)] = (jnp.sum(xw, axis=-1) * 0.5).astype(o_ref.dtype)

    def emit_max(c):
        off, offh = offs(c)
        xw = x_ref[:, pl.ds(off, W)].reshape(TR, Wh, POOL)
        o_ref[:, pl.ds(offh, Wh)] = jnp.max(xw, axis=-1).astype(o_ref.dtype)

    def run_chunks(emit):
        if n_chunks <= 4:
            for c in range(n_chunks):          # short: static unroll
                emit(c)
        else:
            pl.loop(0, n_chunks)(emit)         # long: bounded live ranges

    if homogeneous:
        # Tile rows all use the same pooling layer -> scalar gate, one variant.
        is_avg_tile = (row0 % C) < (C // 2)

        @pl.when(is_avg_tile)
        def _():
            run_chunks(emit_avg)

        @pl.when(jnp.logical_not(is_avg_tile))
        def _():
            run_chunks(emit_max)
    else:
        # Per-row mask; broadcast hoisted out of the chunk loop.
        rows = row0 + jax.lax.broadcasted_iota(jnp.int32, (TR, 1), 0)
        is_avg_b = jnp.broadcast_to((rows % C) < (C // 2), (TR, Wh))

        def emit_both(c):
            off, offh = offs(c)
            xw = x_ref[:, pl.ds(off, W)].astype(jnp.float32).reshape(TR, Wh, POOL)
            avg = jnp.sum(xw, axis=-1) * 0.5
            mx = jnp.max(xw, axis=-1)
            o_ref[:, pl.ds(offh, Wh)] = jnp.where(is_avg_b, avg, mx).astype(o_ref.dtype)

        run_chunks(emit_both)


def _largest_divisor_leq(n, cap, multiple=1):
    """Largest d with d | n, d <= cap, d % multiple == 0 (0 if none)."""
    d = min(n, cap)
    d -= d % multiple
    while d >= multiple:
        if n % d == 0:
            return d
        d -= multiple
    return 0


def split_pooling_head(x, *, max_row_tile=512, max_in_block_bytes=8 << 20):
    """JAX/Pallas equivalent of splitPoolingHead(module=splitPooling,
    poolingLayers=[AvgPool1d(2,2), MaxPool1d(2,2)]).

    x: (B, C, L) float array (PyTorch NCL convention)
    returns: (B, C, L // 2)
    """
    B, C, L = x.shape
    assert C % 2 == 0, "channels must split evenly across the 2 pooling layers"
    assert L % POOL == 0, "length must be divisible by the pooling window"
    Lh = L // POOL
    R = B * C
    itemsize = jnp.dtype(x.dtype).itemsize
    sub = _SUBLANE.get(itemsize, 8)
    half = C // 2

    # ---- row tile (dtype-aware sublane multiple; prefer homogeneous tiles) ----
    tr_het = (_largest_divisor_leq(R, max_row_tile, sub)
              or _largest_divisor_leq(R, max_row_tile, 1))
    tr_hom = _largest_divisor_leq(half, max_row_tile, sub)   # divides C//2 (=> R)
    if tr_hom and tr_hom >= max(sub, tr_het // 4):
        TR = tr_hom                       # homogeneous tiles, not much smaller
    else:
        TR = tr_het
    homogeneous = (half % TR == 0)

    # ---- seq tile: multiple of 256 (unmasked 128-lane output stores) filling
    # the per-block byte budget. Budget keeps 2x(in)+2x(out)=3x(in) blocks well
    # under v7x's 64 MiB physical VMEM / 32 MiB scoped default.
    cap_tl = max(POOL, max_in_block_bytes // (TR * itemsize))
    TL = (_largest_divisor_leq(L, cap_tl, 256)
          or _largest_divisor_leq(L, cap_tl, POOL)
          or L)

    # v7x megacore: avoid a degenerate single-block grid when it can be split.
    if (R // TR) * (L // TL) == 1 and TL % 512 == 0:
        TL //= 2
    TLh = TL // POOL

    grid = (R // TR, L // TL)
    in_block_bytes = TR * TL * itemsize
    vmem_limit = int(min(60 << 20, max(24 << 20, 4 * in_block_bytes)))

    # Free, metadata-only view: no HBM traffic outside the single kernel pass.
    x2 = x.reshape(R, L)

    out2 = pl.pallas_call(
        functools.partial(_split_pool_kernel, C=C, homogeneous=homogeneous),
        out_shape=jax.ShapeDtypeStruct((R, Lh), x.dtype),
        grid=grid,
        in_specs=[pl.BlockSpec((TR, TL), lambda i, j: (i, j))],
        out_specs=pl.BlockSpec((TR, TLh), lambda i, j: (i, j)),
        compiler_params=pltpu.CompilerParams(
            dimension_semantics=("parallel", "parallel"),
            vmem_limit_bytes=vmem_limit),
        cost_estimate=pl.CostEstimate(
            flops=2 * R * L,
            transcendentals=0,
            bytes_accessed=int(R * L * itemsize + R * Lh * itemsize)),
    )(x2)

    return out2.reshape(B, C, Lh)


def _reference(x):
    """Pure-JAX reference matching the PyTorch semantics."""
    B, C, L = x.shape
    half = C // 2
    xw = x.reshape(B, C, L // POOL, POOL)
    avg = xw[:, :half].mean(axis=-1)   # AvgPool1d(2,2) on channel chunk 0
    mx = xw[:, half:].max(axis=-1)     # MaxPool1d(2,2) on channel chunk 1
    return jnp.concatenate([avg, mx], axis=1)


if __name__ == "__main__":
    key = jax.random.PRNGKey(0)
    k1, k2 = jax.random.split(key)

    # Small shapes consistent with the module: batch=2, channels=4 (2 channels
    # per pooling layer), seq=256.  Exercises the per-row-mask path.
    x1 = jax.random.normal(k1, (2, 4, 256), dtype=jnp.float32)
    out1 = jax.block_until_ready(split_pooling_head(x1))
    assert out1.shape == (2, 4, 128), out1.shape
    assert bool(jnp.allclose(out1, _reference(x1), atol=1e-6, rtol=1e-6)), \
        "Pallas output mismatch vs reference (heterogeneous path)"

    # Second small case: exercises the homogeneous pl.when specialization and
    # the multi-chunk tile path.
    x2 = jax.random.normal(k2, (2, 32, 512), dtype=jnp.float32)
    out2 = jax.block_until_ready(split_pooling_head(x2))
    assert out2.shape == (2, 32, 256), out2.shape
    assert bool(jnp.allclose(out2, _reference(x2), atol=1e-6, rtol=1e-6)), \
        "Pallas output mismatch vs reference (homogeneous path)"

    print("KERNEL_OK")
</pallas_src>

<mosaic_0001>
module attributes {stable_mosaic.version = 11 : i64} {
  func.func @_split_pool_kernel(%arg0: i32, %arg1: i32, %arg2: memref<8x256xf32, #tpu.memory_space<vmem>>, %arg3: memref<8x128xf32, #tpu.memory_space<vmem>>) attributes {dimension_semantics = [#tpu.dimension_semantics<parallel>, #tpu.dimension_semantics<parallel>], iteration_bounds = array<i64: 1, 1>, scalar_prefetch = 0 : i64, scratch_operands = 0 : i64, tpu.core_type = #tpu.core_type<tc>, window_params = [{transform_indices = @transform_0, window_bounds = array<i64: 8, 256>}, {transform_indices = @transform_1, window_bounds = array<i64: 8, 128>}]} {
    %c8_i32 = arith.constant 8 : i32
    %0 = arith.muli %arg0, %c8_i32 : i32
    %1 = tpu.iota {dimensions = array<i32: 0>} : vector<8x1xi32>
    %2 = vector.broadcast %0 : i32 to vector<8x1xi32>
    %3 = arith.addi %2, %1 : vector<8x1xi32>
    %c4_i32 = arith.constant 4 : i32
    %c0_i32 = arith.constant 0 : i32
    %4 = arith.cmpi eq, %c4_i32, %c0_i32 : i32
    %c1_i32 = arith.constant 1 : i32
    %5 = arith.select %4, %c1_i32, %c4_i32 : i32
    %6 = vector.broadcast %5 : i32 to vector<8x1xi32>
    %7 = arith.remsi %3, %6 : vector<8x1xi32>
    %c0_i32_0 = arith.constant 0 : i32
    %8 = vector.broadcast %c0_i32_0 : i32 to vector<8x1xi32>
    %9 = arith.cmpi ne, %7, %8 : vector<8x1xi32>
    %c0_i32_1 = arith.constant 0 : i32
    %10 = vector.broadcast %c0_i32_1 : i32 to vector<8x1xi32>
    %11 = arith.cmpi slt, %7, %10 : vector<8x1xi32>
    %c0_i32_2 = arith.constant 0 : i32
    %12 = arith.cmpi slt, %5, %c0_i32_2 : i32
    %13 = vector.broadcast %12 : i1 to vector<8x1xi1>
    %14 = vector.broadcast %13 : vector<8x1xi1> to vector<8x1xi1>
    %15 = arith.xori %11, %14 : vector<8x1xi1>
    %16 = arith.andi %15, %9 : vector<8x1xi1>
    %17 = vector.broadcast %5 : i32 to vector<8x1xi32>
    %18 = arith.addi %7, %17 : vector<8x1xi32>
    %19 = arith.select %16, %18, %7 : vector<8x1xi1>, vector<8x1xi32>
    %c2_i32 = arith.constant 2 : i32
    %20 = vector.broadcast %c2_i32 : i32 to vector<8x1xi32>
    %21 = arith.cmpi slt, %19, %20 : vector<8x1xi32>
    %22 = vector.shape_cast %21 : vector<8x1xi1> to vector<8x1xi1>
    %23 = vector.broadcast %22 : vector<8x1xi1> to vector<8x128xi1>
    %c0 = arith.constant 0 : index
    %c0_3 = arith.constant 0 : index
    %24 = vector.load %arg2[%c0, %c0_3] : memref<8x256xf32, #tpu.memory_space<vmem>>, vector<8x256xf32>
    %25 = vector.shape_cast %24 : vector<8x256xf32> to vector<8x128x2xf32>
    %cst = arith.constant dense<0.000000e+00> : vector<8x128xf32>
    %26 = vector.multi_reduction <add>, %25, %cst [2] : vector<8x128x2xf32> to vector<8x128xf32>
    %cst_4 = arith.constant 5.000000e-01 : f32
    %27 = vector.broadcast %cst_4 : f32 to vector<8x128xf32>
    %28 = arith.mulf %26, %27 : vector<8x128xf32>
    %cst_5 = arith.constant dense<0xFF800000> : vector<8x128xf32>
    %29 = vector.multi_reduction <maximumf>, %25, %cst_5 [2] : vector<8x128x2xf32> to vector<8x128xf32>
    %30 = arith.select %23, %28, %29 : vector<8x128xi1>, vector<8x128xf32>
    %c0_6 = arith.constant 0 : index
    %c0_7 = arith.constant 0 : index
    %31 = vector.load %arg3[%c0_6, %c0_7] : memref<8x128xf32, #tpu.memory_space<vmem>>, vector<8x128xf32>
    tpu.vector_store %arg3[%c0_6, %c0_7], %30 {strides = array<i32>} : memref<8x128xf32, #tpu.memory_space<vmem>>, vector<8x128xf32>,
    return
  }
  func.func @transform_0(%arg0: i32, %arg1: i32) -> (i32, i32) {
    %c0_i32 = arith.constant 0 : i32
    return %arg0, %arg1 : i32, i32
  }
  func.func @transform_1(%arg0: i32, %arg1: i32) -> (i32, i32) {
    %c0_i32 = arith.constant 0 : i32
    return %arg0, %arg1 : i32, i32
  }
}

</mosaic_0001>

<llo_original>
// kernel: tpu_custom_call.1
$region0: #{tpu_custom_call.1}
  #allocation0 [shape = 'u32[]', space=smem, size = 0x4, offset = 0x4, fixed_abs, tag = 'smem constant byte address 0x4 - core index']
  #allocation1 [shape = 'u32[72,128]{1,0:T(1,128)}', space=vmem, size = 0x9000, scoped, tag = 'internal scratch']
  %s0 = inlined_call_operand.hbm [shape: f32[8,256], index: 0, kind: input, shape index: {}]
  %s1 = inlined_call_operand.hbm [shape: f32[8,128], index: 1, kind: output, shape index: {}]
  %s2 = sld [smem:[#allocation0]]
  $region18: #{tpu_custom_call.1} parent=0
    _
  %s4 = ssub.s32 1, %s2
  %s5 = scalar_select 0, %s4, %s2
  $region1: #{tpu_custom_call.1} parent=0
    #allocation2 [shape = 'u8[8192]{0}', space=vmem, size = 0x2000, scoped, tag = 'input window, operand 0, single buffered']
    #allocation3 [shape = 's32[1]{0}', space=sflag, size = 0x4, scoped, tag = 'scoped memory for tpu_custom_call.1']
    #allocation4 [shape = 's32[1]{0}', space=sflag, size = 0x4, scoped, tag = 'scoped memory for tpu_custom_call.1']
    #allocation5 [shape = 'u8[4096]{0}', space=vmem, size = 0x1000, scoped, tag = 'output window, operand 0, single buffered']
    %6 = vsyncpa [#allocation3], 0
    %7 = vsyncpa [#allocation4], 0
    // Predicated region
    $region2: #{tpu_custom_call.1} parent=1 // pred_check
      _
    $region3: #{tpu_custom_call.1} parent=1 // pred_check_branch
      %9 = sbr.rel (0) target = $region5
    $region4: #{tpu_custom_call.1} parent=1 // pred_region
      %11 = vsyncadd [#allocation3], 0
      %s13 = sshll.u32 %s0, 4
      %s14 = int_to_ptr.hbm [resolvable:$true] %s13
      %s15 = sshll.u32 [#allocation2], 4
      %s16 = int_to_ptr.vmem [resolvable:$true] %s15
      %18 = dma.hbm_to_vmem [thread:$0]  %s14, 256, %s16, [#allocation3]
    $region5: #{tpu_custom_call.1} parent=1 // pred_fallthru
      _
    // Predicated region
    $region6: #{tpu_custom_call.1} parent=1 // pred_check
      _
    $region7: #{tpu_custom_call.1} parent=1 // pred_check_branch
      %20 = sbr.rel (0) target = $region9
    $region8: #{tpu_custom_call.1} parent=1 // pred_region
      %22 = dma.done [#allocation3], 256
    $region9: #{tpu_custom_call.1} parent=1 // pred_fallthru
      _
    %s23 = smul.u32 0, 8
    %v24 = vlaneseq
    %v25 = vshrl.u32 %v24, 7
    %v26 = vstv %s23
    %v27 = vadd.s32 %v26, %v25
    %vm28 = vcmp.lt.s32.totalorder %v27, 0
    %v29 = vsub.s32 0, %v27
    %v30 = vsel %vm28, %v29, %v27
    %v31 = vshrl.u32 %v30, 2
    %v32 = vand.u32 %v30, 3
    %v33 = vsub.s32 0, %v32
    %v34 = vsel %vm28, %v33, %v32
    %vm35 = vcmp.ne.s32.totalorder %v34, 0
    %vm36 = vcmp.lt.s32.totalorder %v34, 0
    %vm37 = vmand %vm36, %vm35
    %v38 = vadd.s32 %v34, 4
    %v39 = vsel %vm37, %v38, %v34
    %vm40 = vcmp.lt.s32.totalorder %v39, 2
    %v41 = vsel %vm40, 1, 0
    %vm42 = vcmp.eq.s32.totalorder %v41, 1
    %v43 = vld [vmem:[#allocation2] sm:$0xff]
    %v44 = vld [vmem:[#allocation2 + $0x8] sm:$0xff]
    %46 = vrot.lane.b32.xlu0 %v43, 126
    %v47 = vpop.permute.xlu0 %46
    %49 = vrot.lane.b32.xlu0 %v43, 124
    %v50 = vpop.permute.xlu0 %49
    %52 = vrot.lane.b32.xlu0 %v43, 122
    %v53 = vpop.permute.xlu0 %52
    %55 = vrot.lane.b32.xlu0 %v43, 120
    %v56 = vpop.permute.xlu0 %55
    %58 = vrot.lane.b32.xlu0 %v43, 118
    %v59 = vpop.permute.xlu0 %58
    %61 = vrot.lane.b32.xlu0 %v43, 116
    %v62 = vpop.permute.xlu0 %61
    %64 = vrot.lane.b32.xlu0 %v43, 114
    %v65 = vpop.permute.xlu0 %64
    %67 = vrot.lane.b32.xlu0 %v43, 112
    %v68 = vpop.permute.xlu0 %67
    %70 = vrot.lane.b32.xlu0 %v43, 110
    %v71 = vpop.permute.xlu0 %70
    %73 = vrot.lane.b32.xlu0 %v43, 108
    %v74 = vpop.permute.xlu0 %73
    %76 = vrot.lane.b32.xlu0 %v43, 106
    %v77 = vpop.permute.xlu0 %76
    %79 = vrot.lane.b32.xlu0 %v43, 104
    %v80 = vpop.permute.xlu0 %79
    %82 = vrot.lane.b32.xlu0 %v43, 102
    %v83 = vpop.permute.xlu0 %82
    %85 = vrot.lane.b32.xlu0 %v43, 100
    %v86 = vpop.permute.xlu0 %85
    %88 = vrot.lane.b32.xlu0 %v43, 98
    %v89 = vpop.permute.xlu0 %88
    %91 = vrot.lane.b32.xlu0 %v43, 96
    %v92 = vpop.permute.xlu0 %91
    %94 = vrot.lane.b32.xlu0 %v43, 94
    %v95 = vpop.permute.xlu0 %94
    %97 = vrot.lane.b32.xlu0 %v43, 92
    %v98 = vpop.permute.xlu0 %97
    %100 = vrot.lane.b32.xlu0 %v43, 90
    %v101 = vpop.permute.xlu0 %100
    %103 = vrot.lane.b32.xlu0 %v43, 88
    %v104 = vpop.permute.xlu0 %103
    %106 = vrot.lane.b32.xlu0 %v43, 86
    %v107 = vpop.permute.xlu0 %106
    %109 = vrot.lane.b32.xlu0 %v43, 84
    %v110 = vpop.permute.xlu0 %109
    %112 = vrot.lane.b32.xlu0 %v43, 82
    %v113 = vpop.permute.xlu0 %112
    %115 = vrot.lane.b32.xlu0 %v43, 80
    %v116 = vpop.permute.xlu0 %115
    %118 = vrot.lane.b32.xlu0 %v43, 78
    %v119 = vpop.permute.xlu0 %118
    %121 = vrot.lane.b32.xlu0 %v43, 76
    %v122 = vpop.permute.xlu0 %121
    %124 = vrot.lane.b32.xlu0 %v43, 74
    %v125 = vpop.permute.xlu0 %124
    %127 = vrot.lane.b32.xlu0 %v43, 72
    %v128 = vpop.permute.xlu0 %127
    %130 = vrot.lane.b32.xlu0 %v43, 70
    %v131 = vpop.permute.xlu0 %130
    %133 = vrot.lane.b32.xlu0 %v43, 68
    %v134 = vpop.permute.xlu0 %133
    %136 = vrot.lane.b32.xlu0 %v43, 66
    %v137 = vpop.permute.xlu0 %136
    %139 = vrot.lane.b32.xlu0 %v43, 64
    %v140 = vpop.permute.xlu0 %139
    %142 = vrot.lane.b32.xlu0 %v43, 62
    %v143 = vpop.permute.xlu0 %142
    %145 = vrot.lane.b32.xlu0 %v43, 60
    %v146 = vpop.permute.xlu0 %145
    %148 = vrot.lane.b32.xlu0 %v43, 58
    %v149 = vpop.permute.xlu0 %148
    %151 = vrot.lane.b32.xlu0 %v43, 56
    %v152 = vpop.permute.xlu0 %151
    %154 = vrot.lane.b32.xlu0 %v43, 54
    %v155 = vpop.permute.xlu0 %154
    %157 = vrot.lane.b32.xlu0 %v43, 52
    %v158 = vpop.permute.xlu0 %157
    %160 = vrot.lane.b32.xlu0 %v43, 50
    %v161 = vpop.permute.xlu0 %160
    %163 = vrot.lane.b32.xlu0 %v43, 48
    %v164 = vpop.permute.xlu0 %163
    %166 = vrot.lane.b32.xlu0 %v43, 46
    %v167 = vpop.permute.xlu0 %166
    %169 = vrot.lane.b32.xlu0 %v43, 44
    %v170 = vpop.permute.xlu0 %169
    %172 = vrot.lane.b32.xlu0 %v43, 42
    %v173 = vpop.permute.xlu0 %172
    %175 = vrot.lane.b32.xlu0 %v43, 40
    %v176 = vpop.permute.xlu0 %175
    %178 = vrot.lane.b32.xlu0 %v43, 38
    %v179 = vpop.permute.xlu0 %178
    %181 = vrot.lane.b32.xlu0 %v43, 36
    %v182 = vpop.permute.xlu0 %181
    %184 = vrot.lane.b32.xlu0 %v43, 34
    %v185 = vpop.permute.xlu0 %184
    %187 = vrot.lane.b32.xlu0 %v43, 32
    %v188 = vpop.permute.xlu0 %187
    %190 = vrot.lane.b32.xlu0 %v43, 30
    %v191 = vpop.permute.xlu0 %190
    %193 = vrot.lane.b32.xlu0 %v43, 28
    %v194 = vpop.permute.xlu0 %193
    %196 = vrot.lane.b32.xlu0 %v43, 26
    %v197 = vpop.permute.xlu0 %196
    %199 = vrot.lane.b32.xlu0 %v43, 24
    %v200 = vpop.permute.xlu0 %199
    %202 = vrot.lane.b32.xlu0 %v43, 22
    %v203 = vpop.permute.xlu0 %202
    %205 = vrot.lane.b32.xlu0 %v43, 20
    %v206 = vpop.permute.xlu0 %205
    %208 = vrot.lane.b32.xlu0 %v43, 18
    %v209 = vpop.permute.xlu0 %208
    %211 = vrot.lane.b32.xlu0 %v43, 16
    %v212 = vpop.permute.xlu0 %211
    %214 = vrot.lane.b32.xlu0 %v43, 14
    %v215 = vpop.permute.xlu0 %214
    %217 = vrot.lane.b32.xlu0 %v43, 12
    %v218 = vpop.permute.xlu0 %217
    %220 = vrot.lane.b32.xlu0 %v43, 10
    %v221 = vpop.permute.xlu0 %220
    %223 = vrot.lane.b32.xlu0 %v43, 8
    %v224 = vpop.permute.xlu0 %223
    %226 = vrot.lane.b32.xlu0 %v43, 6
    %v227 = vpop.permute.xlu0 %226
    %229 = vrot.lane.b32.xlu0 %v43, 4
    %v230 = vpop.permute.xlu0 %229
    %232 = vrot.lane.b32.xlu0 %v43, 2
    %v233 = vpop.permute.xlu0 %232
    %236 = vrot.lane.b32.xlu0 %v44, 126
    %v237 = vpop.permute.xlu0 %236
    %239 = vrot.lane.b32.xlu0 %v44, 124
    %v240 = vpop.permute.xlu0 %239
    %242 = vrot.lane.b32.xlu0 %v44, 122
    %v243 = vpop.permute.xlu0 %242
    %245 = vrot.lane.b32.xlu0 %v44, 120
    %v246 = vpop.permute.xlu0 %245
    %248 = vrot.lane.b32.xlu0 %v44, 118
    %v249 = vpop.permute.xlu0 %248
    %251 = vrot.lane.b32.xlu0 %v44, 116
    %v252 = vpop.permute.xlu0 %251
    %254 = vrot.lane.b32.xlu0 %v44, 114
    %v255 = vpop.permute.xlu0 %254
    %257 = vrot.lane.b32.xlu0 %v44, 112
    %v258 = vpop.permute.xlu0 %257
    %260 = vrot.lane.b32.xlu0 %v44, 110
    %v261 = vpop.permute.xlu0 %260
    %263 = vrot.lane.b32.xlu0 %v44, 108
    %v264 = vpop.permute.xlu0 %263
    %266 = vrot.lane.b32.xlu0 %v44, 106
    %v267 = vpop.permute.xlu0 %266
    %269 = vrot.lane.b32.xlu0 %v44, 104
    %v270 = vpop.permute.xlu0 %269
    %272 = vrot.lane.b32.xlu0 %v44, 102
    %v273 = vpop.permute.xlu0 %272
    %275 = vrot.lane.b32.xlu0 %v44, 100
    %v276 = vpop.permute.xlu0 %275
    %278 = vrot.lane.b32.xlu0 %v44, 98
    %v279 = vpop.permute.xlu0 %278
    %281 = vrot.lane.b32.xlu0 %v44, 96
    %v282 = vpop.permute.xlu0 %281
    %284 = vrot.lane.b32.xlu0 %v44, 94
    %v285 = vpop.permute.xlu0 %284
    %287 = vrot.lane.b32.xlu0 %v44, 92
    %v288 = vpop.permute.xlu0 %287
    %290 = vrot.lane.b32.xlu0 %v44, 90
    %v291 = vpop.permute.xlu0 %290
    %293 = vrot.lane.b32.xlu0 %v44, 88
    %v294 = vpop.permute.xlu0 %293
    %296 = vrot.lane.b32.xlu0 %v44, 86
    %v297 = vpop.permute.xlu0 %296
    %299 = vrot.lane.b32.xlu0 %v44, 84
    %v300 = vpop.permute.xlu0 %299
    %302 = vrot.lane.b32.xlu0 %v44, 82
    %v303 = vpop.permute.xlu0 %302
    %305 = vrot.lane.b32.xlu0 %v44, 80
    %v306 = vpop.permute.xlu0 %305
    %308 = vrot.lane.b32.xlu0 %v44, 78
    %v309 = vpop.permute.xlu0 %308
    %311 = vrot.lane.b32.xlu0 %v44, 76
    %v312 = vpop.permute.xlu0 %311
    %314 = vrot.lane.b32.xlu0 %v44, 74
    %v315 = vpop.permute.xlu0 %314
    %317 = vrot.lane.b32.xlu0 %v44, 72
    %v318 = vpop.permute.xlu0 %317
    %320 = vrot.lane.b32.xlu0 %v44, 70
    %v321 = vpop.permute.xlu0 %320
    %323 = vrot.lane.b32.xlu0 %v44, 68
    %v324 = vpop.permute.xlu0 %323
    %326 = vrot.lane.b32.xlu0 %v44, 66
    %v327 = vpop.permute.xlu0 %326
    %329 = vrot.lane.b32.xlu0 %v44, 64
    %v330 = vpop.permute.xlu0 %329
    %332 = vrot.lane.b32.xlu0 %v44, 62
    %v333 = vpop.permute.xlu0 %332
    %335 = vrot.lane.b32.xlu0 %v44, 60
    %v336 = vpop.permute.xlu0 %335
    %338 = vrot.lane.b32.xlu0 %v44, 58
    %v339 = vpop.permute.xlu0 %338
    %341 = vrot.lane.b32.xlu0 %v44, 56
    %v342 = vpop.permute.xlu0 %341
    %344 = vrot.lane.b32.xlu0 %v44, 54
    %v345 = vpop.permute.xlu0 %344
    %347 = vrot.lane.b32.xlu0 %v44, 52
    %v348 = vpop.permute.xlu0 %347
    %350 = vrot.lane.b32.xlu0 %v44, 50
    %v351 = vpop.permute.xlu0 %350
    %353 = vrot.lane.b32.xlu0 %v44, 48
    %v354 = vpop.permute.xlu0 %353
    %356 = vrot.lane.b32.xlu0 %v44, 46
    %v357 = vpop.permute.xlu0 %356
    %359 = vrot.lane.b32.xlu0 %v44, 44
    %v360 = vpop.permute.xlu0 %359
    %362 = vrot.lane.b32.xlu0 %v44, 42
    %v363 = vpop.permute.xlu0 %362
    %365 = vrot.lane.b32.xlu0 %v44, 40
    %v366 = vpop.permute.xlu0 %365
    %368 = vrot.lane.b32.xlu0 %v44, 38
    %v369 = vpop.permute.xlu0 %368
    %371 = vrot.lane.b32.xlu0 %v44, 36
    %v372 = vpop.permute.xlu0 %371
    %374 = vrot.lane.b32.xlu0 %v44, 34
    %v375 = vpop.permute.xlu0 %374
    %377 = vrot.lane.b32.xlu0 %v44, 32
    %v378 = vpop.permute.xlu0 %377
    %380 = vrot.lane.b32.xlu0 %v44, 30
    %v381 = vpop.permute.xlu0 %380
    %383 = vrot.lane.b32.xlu0 %v44, 28
    %v384 = vpop.permute.xlu0 %383
    %386 = vrot.lane.b32.xlu0 %v44, 26
    %v387 = vpop.permute.xlu0 %386
    %389 = vrot.lane.b32.xlu0 %v44, 24
    %v390 = vpop.permute.xlu0 %389
    %392 = vrot.lane.b32.xlu0 %v44, 22
    %v393 = vpop.permute.xlu0 %392
    %395 = vrot.lane.b32.xlu0 %v44, 20
    %v396 = vpop.permute.xlu0 %395
    %398 = vrot.lane.b32.xlu0 %v44, 18
    %v399 = vpop.permute.xlu0 %398
    %401 = vrot.lane.b32.xlu0 %v44, 16
    %v402 = vpop.permute.xlu0 %401
    %404 = vrot.lane.b32.xlu0 %v44, 14
    %v405 = vpop.permute.xlu0 %404
    %407 = vrot.lane.b32.xlu0 %v44, 12
    %v408 = vpop.permute.xlu0 %407
    %410 = vrot.lane.b32.xlu0 %v44, 10
    %v411 = vpop.permute.xlu0 %410
    %413 = vrot.lane.b32.xlu0 %v44, 8
    %v414 = vpop.permute.xlu0 %413
    %416 = vrot.lane.b32.xlu0 %v44, 6
    %v417 = vpop.permute.xlu0 %416
    %419 = vrot.lane.b32.xlu0 %v44, 4
    %v420 = vpop.permute.xlu0 %419
    %422 = vrot.lane.b32.xlu0 %v44, 2
    %v423 = vpop.permute.xlu0 %422
    %v425 = vrot.slane %v50, 4
    %vm426 = vcmask 1047556
    %v427 = vsel %vm426, %v425, %v43
    %v428 = vrot.slane %v43, 4
    %v429 = vsel %vm426, %v50, %v428
    %v431 = vunpack.c.l.s4 1983009808
    %v432 = vunpack.c.0.s8 %v431
    %v433 = vperm.slane %v427, %v432
    %v435 = vunpack.c.l.s4 1983009808
    %v436 = vunpack.c.0.s8 %v435
    %v437 = vperm.slane %v429, %v436
    %v438 = vrot.slane %v53, 4
    %v439 = vsel %vm426, %v438, %v47
    %v440 = vrot.slane %v47, 4
    %v441 = vsel %vm426, %v53, %v440
    %v443 = vunpack.c.l.s4 1983009808
    %v444 = vunpack.c.0.s8 %v443
    %v445 = vperm.slane %v439, %v444
    %v447 = vunpack.c.l.s4 1983009808
    %v448 = vunpack.c.0.s8 %v447
    %v449 = vperm.slane %v441, %v448
    %v450 = vrot.slane %v62, 4
    %v451 = vsel %vm426, %v450, %v56
    %v452 = vrot.slane %v56, 4
    %v453 = vsel %vm426, %v62, %v452
    %v455 = vunpack.c.l.s4 1983009808
    %v456 = vunpack.c.0.s8 %v455
    %v457 = vperm.slane %v451, %v456
    %v459 = vunpack.c.l.s4 1983009808
    %v460 = vunpack.c.0.s8 %v459
    %v461 = vperm.slane %v453, %v460
    %v462 = vrot.slane %v65, 4
    %v463 = vsel %vm426, %v462, %v59
    %v464 = vrot.slane %v59, 4
    %v465 = vsel %vm426, %v65, %v464
    %v467 = vunpack.c.l.s4 1983009808
    %v468 = vunpack.c.0.s8 %v467
    %v469 = vperm.slane %v463, %v468
    %v471 = vunpack.c.l.s4 1983009808
    %v472 = vunpack.c.0.s8 %v471
    %v473 = vperm.slane %v465, %v472
    %v474 = vrot.slane %v445, 4
    %v475 = vsel %vm426, %v474, %v433
    %v476 = vrot.slane %v433, 4
    %v477 = vsel %vm426, %v445, %v476
    %v479 = vunpack.c.l.s4 1934713408
    %v480 = vunpack.c.0.s8 %v479
    %v481 = vperm.slane %v475, %v480
    %v483 = vunpack.c.l.s4 1934713408
    %v484 = vunpack.c.0.s8 %v483
    %v485 = vperm.slane %v477, %v484
    %v486 = vrot.slane %v449, 4
    %v487 = vsel %vm426, %v486, %v437
    %v488 = vrot.slane %v437, 4
    %v489 = vsel %vm426, %v449, %v488
    %v491 = vunpack.c.l.s4 1934713408
    %v492 = vunpack.c.0.s8 %v491
    %v493 = vperm.slane %v487, %v492
    %v495 = vunpack.c.l.s4 1934713408
    %v496 = vunpack.c.0.s8 %v495
    %v497 = vperm.slane %v489, %v496
    %v498 = vrot.slane %v469, 4
    %v499 = vsel %vm426, %v498, %v457
    %v500 = vrot.slane %v457, 4
    %v501 = vsel %vm426, %v469, %v500
    %v503 = vunpack.c.l.s4 1934713408
    %v504 = vunpack.c.0.s8 %v503
    %v505 = vperm.slane %v499, %v504
    %v507 = vunpack.c.l.s4 1934713408
    %v508 = vunpack.c.0.s8 %v507
    %v509 = vperm.slane %v501, %v508
    %v510 = vrot.slane %v473, 4
    %v511 = vsel %vm426, %v510, %v461
    %v512 = vrot.slane %v461, 4
    %v513 = vsel %vm426, %v473, %v512
    %v515 = vunpack.c.l.s4 1934713408
    %v516 = vunpack.c.0.s8 %v515
    %v517 = vperm.slane %v511, %v516
    %v519 = vunpack.c.l.s4 1934713408
    %v520 = vunpack.c.0.s8 %v519
    %v521 = vperm.slane %v513, %v520
    %v522 = vrot.slane %v505, 4
    %v523 = vsel %vm426, %v522, %v481
    %v524 = vrot.slane %v481, 4
    %v525 = vsel %vm426, %v505, %v524
    %v526 = vrot.slane %v509, 4
    %v527 = vsel %vm426, %v526, %v485
    %v528 = vrot.slane %v485, 4
    %v529 = vsel %vm426, %v509, %v528
    %v530 = vrot.slane %v517, 4
    %v531 = vsel %vm426, %v530, %v493
    %v532 = vrot.slane %v493, 4
    %v533 = vsel %vm426, %v517, %v532
    %v534 = vrot.slane %v521, 4
    %v535 = vsel %vm426, %v534, %v497
    %v536 = vrot.slane %v497, 4
    %v537 = vsel %vm426, %v521, %v536
    %v538 = vrot.slane %v74, 4
    %v539 = vsel %vm426, %v538, %v68
    %v540 = vrot.slane %v68, 4
    %v541 = vsel %vm426, %v74, %v540
    %v543 = vunpack.c.l.s4 1983009808
    %v544 = vunpack.c.0.s8 %v543
    %v545 = vperm.slane %v539, %v544
    %v547 = vunpack.c.l.s4 1983009808
    %v548 = vunpack.c.0.s8 %v547
    %v549 = vperm.slane %v541, %v548
    %v550 = vrot.slane %v77, 4
    %v551 = vsel %vm426, %v550, %v71
    %v552 = vrot.slane %v71, 4
    %v553 = vsel %vm426, %v77, %v552
    %v555 = vunpack.c.l.s4 1983009808
    %v556 = vunpack.c.0.s8 %v555
    %v557 = vperm.slane %v551, %v556
    %v559 = vunpack.c.l.s4 1983009808
    %v560 = vunpack.c.0.s8 %v559
    %v561 = vperm.slane %v553, %v560
    %v562 = vrot.slane %v86, 4
    %v563 = vsel %vm426, %v562, %v80
    %v564 = vrot.slane %v80, 4
    %v565 = vsel %vm426, %v86, %v564
    %v567 = vunpack.c.l.s4 1983009808
    %v568 = vunpack.c.0.s8 %v567
    %v569 = vperm.slane %v563, %v568
    %v571 = vunpack.c.l.s4 1983009808
    %v572 = vunpack.c.0.s8 %v571
    %v573 = vperm.slane %v565, %v572
    %v574 = vrot.slane %v89, 4
    %v575 = vsel %vm426, %v574, %v83
    %v576 = vrot.slane %v83, 4
    %v577 = vsel %vm426, %v89, %v576
    %v579 = vunpack.c.l.s4 1983009808
    %v580 = vunpack.c.0.s8 %v579
    %v581 = vperm.slane %v575, %v580
    %v583 = vunpack.c.l.s4 1983009808
    %v584 = vunpack.c.0.s8 %v583
    %v585 = vperm.slane %v577, %v584
    %v586 = vrot.slane %v557, 4
    %v587 = vsel %vm426, %v586, %v545
    %v588 = vrot.slane %v545, 4
    %v589 = vsel %vm426, %v557, %v588
    %v591 = vunpack.c.l.s4 1934713408
    %v592 = vunpack.c.0.s8 %v591
    %v593 = vperm.slane %v587, %v592
    %v595 = vunpack.c.l.s4 1934713408
    %v596 = vunpack.c.0.s8 %v595
    %v597 = vperm.slane %v589, %v596
    %v598 = vrot.slane %v561, 4
    %v599 = vsel %vm426, %v598, %v549
    %v600 = vrot.slane %v549, 4
    %v601 = vsel %vm426, %v561, %v600
    %v603 = vunpack.c.l.s4 1934713408
    %v604 = vunpack.c.0.s8 %v603
    %v605 = vperm.slane %v599, %v604
    %v607 = vunpack.c.l.s4 1934713408
    %v608 = vunpack.c.0.s8 %v607
    %v609 = vperm.slane %v601, %v608
    %v610 = vrot.slane %v581, 4
    %v611 = vsel %vm426, %v610, %v569
    %v612 = vrot.slane %v569, 4
    %v613 = vsel %vm426, %v581, %v612
    %v615 = vunpack.c.l.s4 1934713408
    %v616 = vunpack.c.0.s8 %v615
    %v617 = vperm.slane %v611, %v616
    %v619 = vunpack.c.l.s4 1934713408
    %v620 = vunpack.c.0.s8 %v619
    %v621 = vperm.slane %v613, %v620
    %v622 = vrot.slane %v585, 4
    %v623 = vsel %vm426, %v622, %v573
    %v624 = vrot.slane %v573, 4
    %v625 = vsel %vm426, %v585, %v624
    %v627 = vunpack.c.l.s4 1934713408
    %v628 = vunpack.c.0.s8 %v627
    %v629 = vperm.slane %v623, %v628
    %v631 = vunpack.c.l.s4 1934713408
    %v632 = vunpack.c.0.s8 %v631
    %v633 = vperm.slane %v625, %v632
    %v634 = vrot.slane %v617, 4
    %v635 = vsel %vm426, %v634, %v593
    %v636 = vrot.slane %v593, 4
    %v637 = vsel %vm426, %v617, %v636
    %v638 = vrot.slane %v621, 4
    %v639 = vsel %vm426, %v638, %v597
    %v640 = vrot.slane %v597, 4
    %v641 = vsel %vm426, %v621, %v640
    %v642 = vrot.slane %v629, 4
    %v643 = vsel %vm426, %v642, %v605
    %v644 = vrot.slane %v605, 4
    %v645 = vsel %vm426, %v629, %v644
    %v646 = vrot.slane %v633, 4
    %v647 = vsel %vm426, %v646, %v609
    %v648 = vrot.slane %v609, 4
    %v649 = vsel %vm426, %v633, %v648
    %v650 = vrot.slane %v98, 4
    %v651 = vsel %vm426, %v650, %v92
    %v652 = vrot.slane %v92, 4
    %v653 = vsel %vm426, %v98, %v652
    %v655 = vunpack.c.l.s4 1983009808
    %v656 = vunpack.c.0.s8 %v655
    %v657 = vperm.slane %v651, %v656
    %v659 = vunpack.c.l.s4 1983009808
    %v660 = vunpack.c.0.s8 %v659
    %v661 = vperm.slane %v653, %v660
    %v662 = vrot.slane %v101, 4
    %v663 = vsel %vm426, %v662, %v95
    %v664 = vrot.slane %v95, 4
    %v665 = vsel %vm426, %v101, %v664
    %v667 = vunpack.c.l.s4 1983009808
    %v668 = vunpack.c.0.s8 %v667
    %v669 = vperm.slane %v663, %v668
    %v671 = vunpack.c.l.s4 1983009808
    %v672 = vunpack.c.0.s8 %v671
    %v673 = vperm.slane %v665, %v672
    %v674 = vrot.slane %v110, 4
    %v675 = vsel %vm426, %v674, %v104
    %v676 = vrot.slane %v104, 4
    %v677 = vsel %vm426, %v110, %v676
    %v679 = vunpack.c.l.s4 1983009808
    %v680 = vunpack.c.0.s8 %v679
    %v681 = vperm.slane %v675, %v680
    %v683 = vunpack.c.l.s4 1983009808
    %v684 = vunpack.c.0.s8 %v683
    %v685 = vperm.slane %v677, %v684
    %v686 = vrot.slane %v113, 4
    %v687 = vsel %vm426, %v686, %v107
    %v688 = vrot.slane %v107, 4
    %v689 = vsel %vm426, %v113, %v688
    %v691 = vunpack.c.l.s4 1983009808
    %v692 = vunpack.c.0.s8 %v691
    %v693 = vperm.slane %v687, %v692
    %v695 = vunpack.c.l.s4 1983009808
    %v696 = vunpack.c.0.s8 %v695
    %v697 = vperm.slane %v689, %v696
    %v698 = vrot.slane %v669, 4
    %v699 = vsel %vm426, %v698, %v657
    %v700 = vrot.slane %v657, 4
    %v701 = vsel %vm426, %v669, %v700
    %v703 = vunpack.c.l.s4 1934713408
    %v704 = vunpack.c.0.s8 %v703
    %v705 = vperm.slane %v699, %v704
    %v707 = vunpack.c.l.s4 1934713408
    %v708 = vunpack.c.0.s8 %v707
    %v709 = vperm.slane %v701, %v708
    %v710 = vrot.slane %v673, 4
    %v711 = vsel %vm426, %v710, %v661
    %v712 = vrot.slane %v661, 4
    %v713 = vsel %vm426, %v673, %v712
    %v715 = vunpack.c.l.s4 1934713408
    %v716 = vunpack.c.0.s8 %v715
    %v717 = vperm.slane %v711, %v716
    %v719 = vunpack.c.l.s4 1934713408
    %v720 = vunpack.c.0.s8 %v719
    %v721 = vperm.slane %v713, %v720
    %v722 = vrot.slane %v693, 4
    %v723 = vsel %vm426, %v722, %v681
    %v724 = vrot.slane %v681, 4
    %v725 = vsel %vm426, %v693, %v724
    %v727 = vunpack.c.l.s4 1934713408
    %v728 = vunpack.c.0.s8 %v727
    %v729 = vperm.slane %v723, %v728
    %v731 = vunpack.c.l.s4 1934713408
    %v732 = vunpack.c.0.s8 %v731
    %v733 = vperm.slane %v725, %v732
    %v734 = vrot.slane %v697, 4
    %v735 = vsel %vm426, %v734, %v685
    %v736 = vrot.slane %v685, 4
    %v737 = vsel %vm426, %v697, %v736
    %v739 = vunpack.c.l.s4 1934713408
    %v740 = vunpack.c.0.s8 %v739
    %v741 = vperm.slane %v735, %v740
    %v743 = vunpack.c.l.s4 1934713408
    %v744 = vunpack.c.0.s8 %v743
    %v745 = vperm.slane %v737, %v744
    %v746 = vrot.slane %v729, 4
    %v747 = vsel %vm426, %v746, %v705
    %v748 = vrot.slane %v705, 4
    %v749 = vsel %vm426, %v729, %v748
    %v750 = vrot.slane %v733, 4
    %v751 = vsel %vm426, %v750, %v709
    %v752 = vrot.slane %v709, 4
    %v753 = vsel %vm426, %v733, %v752
    %v754 = vrot.slane %v741, 4
    %v755 = vsel %vm426, %v754, %v717
    %v756 = vrot.slane %v717, 4
    %v757 = vsel %vm426, %v741, %v756
    %v758 = vrot.slane %v745, 4
    %v759 = vsel %vm426, %v758, %v721
    %v760 = vrot.slane %v721, 4
    %v761 = vsel %vm426, %v745, %v760
    %v762 = vrot.slane %v122, 4
    %v763 = vsel %vm426, %v762, %v116
    %v764 = vrot.slane %v116, 4
    %v765 = vsel %vm426, %v122, %v764
    %v767 = vunpack.c.l.s4 1983009808
    %v768 = vunpack.c.0.s8 %v767
    %v769 = vperm.slane %v763, %v768
    %v771 = vunpack.c.l.s4 1983009808
    %v772 = vunpack.c.0.s8 %v771
    %v773 = vperm.slane %v765, %v772
    %v774 = vrot.slane %v125, 4
    %v775 = vsel %vm426, %v774, %v119
    %v776 = vrot.slane %v119, 4
    %v777 = vsel %vm426, %v125, %v776
    %v779 = vunpack.c.l.s4 1983009808
    %v780 = vunpack.c.0.s8 %v779
    %v781 = vperm.slane %v775, %v780
    %v783 = vunpack.c.l.s4 1983009808
    %v784 = vunpack.c.0.s8 %v783
    %v785 = vperm.slane %v777, %v784
    %v786 = vrot.slane %v134, 4
    %v787 = vsel %vm426, %v786, %v128
    %v788 = vrot.slane %v128, 4
    %v789 = vsel %vm426, %v134, %v788
    %v791 = vunpack.c.l.s4 1983009808
    %v792 = vunpack.c.0.s8 %v791
    %v793 = vperm.slane %v787, %v792
    %v795 = vunpack.c.l.s4 1983009808
    %v796 = vunpack.c.0.s8 %v795
    %v797 = vperm.slane %v789, %v796
    %v798 = vrot.slane %v137, 4
    %v799 = vsel %vm426, %v798, %v131
    %v800 = vrot.slane %v131, 4
    %v801 = vsel %vm426, %v137, %v800
    %v803 = vunpack.c.l.s4 1983009808
    %v804 = vunpack.c.0.s8 %v803
    %v805 = vperm.slane %v799, %v804
    %v807 = vunpack.c.l.s4 1983009808
    %v808 = vunpack.c.0.s8 %v807
    %v809 = vperm.slane %v801, %v808
    %v810 = vrot.slane %v781, 4
    %v811 = vsel %vm426, %v810, %v769
    %v812 = vrot.slane %v769, 4
    %v813 = vsel %vm426, %v781, %v812
    %v815 = vunpack.c.l.s4 1934713408
    %v816 = vunpack.c.0.s8 %v815
    %v817 = vperm.slane %v811, %v816
    %v819 = vunpack.c.l.s4 1934713408
    %v820 = vunpack.c.0.s8 %v819
    %v821 = vperm.slane %v813, %v820
    %v822 = vrot.slane %v785, 4
    %v823 = vsel %vm426, %v822, %v773
    %v824 = vrot.slane %v773, 4
    %v825 = vsel %vm426, %v785, %v824
    %v827 = vunpack.c.l.s4 1934713408
    %v828 = vunpack.c.0.s8 %v827
    %v829 = vperm.slane %v823, %v828
    %v831 = vunpack.c.l.s4 1934713408
    %v832 = vunpack.c.0.s8 %v831
    %v833 = vperm.slane %v825, %v832
    %v834 = vrot.slane %v805, 4
    %v835 = vsel %vm426, %v834, %v793
    %v836 = vrot.slane %v793, 4
    %v837 = vsel %vm426, %v805, %v836
    %v839 = vunpack.c.l.s4 1934713408
    %v840 = vunpack.c.0.s8 %v839
    %v841 = vperm.slane %v835, %v840
    %v843 = vunpack.c.l.s4 1934713408
    %v844 = vunpack.c.0.s8 %v843
    %v845 = vperm.slane %v837, %v844
    %v846 = vrot.slane %v809, 4
    %v847 = vsel %vm426, %v846, %v797
    %v848 = vrot.slane %v797, 4
    %v849 = vsel %vm426, %v809, %v848
    %v851 = vunpack.c.l.s4 1934713408
    %v852 = vunpack.c.0.s8 %v851
    %v853 = vperm.slane %v847, %v852
    %v855 = vunpack.c.l.s4 1934713408
    %v856 = vunpack.c.0.s8 %v855
    %v857 = vperm.slane %v849, %v856
    %v858 = vrot.slane %v841, 4
    %v859 = vsel %vm426, %v858, %v817
    %v860 = vrot.slane %v817, 4
    %v861 = vsel %vm426, %v841, %v860
    %v862 = vrot.slane %v845, 4
    %v863 = vsel %vm426, %v862, %v821
    %v864 = vrot.slane %v821, 4
    %v865 = vsel %vm426, %v845, %v864
    %v866 = vrot.slane %v853, 4
    %v867 = vsel %vm426, %v866, %v829
    %v868 = vrot.slane %v829, 4
    %v869 = vsel %vm426, %v853, %v868
    %v870 = vrot.slane %v857, 4
    %v871 = vsel %vm426, %v870, %v833
    %v872 = vrot.slane %v833, 4
    %v873 = vsel %vm426, %v857, %v872
    %v874 = vrot.slane %v146, 4
    %v875 = vsel %vm426, %v874, %v140
    %v876 = vrot.slane %v140, 4
    %v877 = vsel %vm426, %v146, %v876
    %v879 = vunpack.c.l.s4 1983009808
    %v880 = vunpack.c.0.s8 %v879
    %v881 = vperm.slane %v875, %v880
    %v883 = vunpack.c.l.s4 1983009808
    %v884 = vunpack.c.0.s8 %v883
    %v885 = vperm.slane %v877, %v884
    %v886 = vrot.slane %v149, 4
    %v887 = vsel %vm426, %v886, %v143
    %v888 = vrot.slane %v143, 4
    %v889 = vsel %vm426, %v149, %v888
    %v891 = vunpack.c.l.s4 1983009808
    %v892 = vunpack.c.0.s8 %v891
    %v893 = vperm.slane %v887, %v892
    %v895 = vunpack.c.l.s4 1983009808
    %v896 = vunpack.c.0.s8 %v895
    %v897 = vperm.slane %v889, %v896
    %v898 = vrot.slane %v158, 4
    %v899 = vsel %vm426, %v898, %v152
    %v900 = vrot.slane %v152, 4
    %v901 = vsel %vm426, %v158, %v900
    %v903 = vunpack.c.l.s4 1983009808
    %v904 = vunpack.c.0.s8 %v903
    %v905 = vperm.slane %v899, %v904
    %v907 = vunpack.c.l.s4 1983009808
    %v908 = vunpack.c.0.s8 %v907
    %v909 = vperm.slane %v901, %v908
    %v910 = vrot.slane %v161, 4
    %v911 = vsel %vm426, %v910, %v155
    %v912 = vrot.slane %v155, 4
    %v913 = vsel %vm426, %v161, %v912
    %v915 = vunpack.c.l.s4 1983009808
    %v916 = vunpack.c.0.s8 %v915
    %v917 = vperm.slane %v911, %v916
    %v919 = vunpack.c.l.s4 1983009808
    %v920 = vunpack.c.0.s8 %v919
    %v921 = vperm.slane %v913, %v920
    %v922 = vrot.slane %v893, 4
    %v923 = vsel %vm426, %v922, %v881
    %v924 = vrot.slane %v881, 4
    %v925 = vsel %vm426, %v893, %v924
    %v927 = vunpack.c.l.s4 1934713408
    %v928 = vunpack.c.0.s8 %v927
    %v929 = vperm.slane %v923, %v928
    %v931 = vunpack.c.l.s4 1934713408
    %v932 = vunpack.c.0.s8 %v931
    %v933 = vperm.slane %v925, %v932
    %v934 = vrot.slane %v897, 4
    %v935 = vsel %vm426, %v934, %v885
    %v936 = vrot.slane %v885, 4
    %v937 = vsel %vm426, %v897, %v936
    %v939 = vunpack.c.l.s4 1934713408
    %v940 = vunpack.c.0.s8 %v939
    %v941 = vperm.slane %v935, %v940
    %v943 = vunpack.c.l.s4 1934713408
    %v944 = vunpack.c.0.s8 %v943
    %v945 = vperm.slane %v937, %v944
    %v946 = vrot.slane %v917, 4
    %v947 = vsel %vm426, %v946, %v905
    %v948 = vrot.slane %v905, 4
    %v949 = vsel %vm426, %v917, %v948
    %v951 = vunpack.c.l.s4 1934713408
    %v952 = vunpack.c.0.s8 %v951
    %v953 = vperm.slane %v947, %v952
    %v955 = vunpack.c.l.s4 1934713408
    %v956 = vunpack.c.0.s8 %v955
    %v957 = vperm.slane %v949, %v956
    %v958 = vrot.slane %v921, 4
    %v959 = vsel %vm426, %v958, %v909
    %v960 = vrot.slane %v909, 4
    %v961 = vsel %vm426, %v921, %v960
    %v963 = vunpack.c.l.s4 1934713408
    %v964 = vunpack.c.0.s8 %v963
    %v965 = vperm.slane %v959, %v964
    %v967 = vunpack.c.l.s4 1934713408
    %v968 = vunpack.c.0.s8 %v967
    %v969 = vperm.slane %v961, %v968
    %v970 = vrot.slane %v953, 4
    %v971 = vsel %vm426, %v970, %v929
    %v972 = vrot.slane %v929, 4
    %v973 = vsel %vm426, %v953, %v972
    %v974 = vrot.slane %v957, 4
    %v975 = vsel %vm426, %v974, %v933
    %v976 = vrot.slane %v933, 4
    %v977 = vsel %vm426, %v957, %v976
    %v978 = vrot.slane %v965, 4
    %v979 = vsel %vm426, %v978, %v941
    %v980 = vrot.slane %v941, 4
    %v981 = vsel %vm426, %v965, %v980
    %v982 = vrot.slane %v969, 4
    %v983 = vsel %vm426, %v982, %v945
    %v984 = vrot.slane %v945, 4
    %v985 = vsel %vm426, %v969, %v984
    %v986 = vrot.slane %v170, 4
    %v987 = vsel %vm426, %v986, %v164
    %v988 = vrot.slane %v164, 4
    %v989 = vsel %vm426, %v170, %v988
    %v991 = vunpack.c.l.s4 1983009808
    %v992 = vunpack.c.0.s8 %v991
    %v993 = vperm.slane %v987, %v992
    %v995 = vunpack.c.l.s4 1983009808
    %v996 = vunpack.c.0.s8 %v995
    %v997 = vperm.slane %v989, %v996
    %v998 = vrot.slane %v173, 4
    %v999 = vsel %vm426, %v998, %v167
    %v1000 = vrot.slane %v167, 4
    %v1001 = vsel %vm426, %v173, %v1000
    %v1003 = vunpack.c.l.s4 1983009808
    %v1004 = vunpack.c.0.s8 %v1003
    %v1005 = vperm.slane %v999, %v1004
    %v1007 = vunpack.c.l.s4 1983009808
    %v1008 = vunpack.c.0.s8 %v1007
    %v1009 = vperm.slane %v1001, %v1008
    %v1010 = vrot.slane %v182, 4
    %v1011 = vsel %vm426, %v1010, %v176
    %v1012 = vrot.slane %v176, 4
    %v1013 = vsel %vm426, %v182, %v1012
    %v1015 = vunpack.c.l.s4 1983009808
    %v1016 = vunpack.c.0.s8 %v1015
    %v1017 = vperm.slane %v1011, %v1016
    %v1019 = vunpack.c.l.s4 1983009808
    %v1020 = vunpack.c.0.s8 %v1019
    %v1021 = vperm.slane %v1013, %v1020
    %v1022 = vrot.slane %v185, 4
    %v1023 = vsel %vm426, %v1022, %v179
    %v1024 = vrot.slane %v179, 4
    %v1025 = vsel %vm426, %v185, %v1024
    %v1027 = vunpack.c.l.s4 1983009808
    %v1028 = vunpack.c.0.s8 %v1027
    %v1029 = vperm.slane %v1023, %v1028
    %v1031 = vunpack.c.l.s4 1983009808
    %v1032 = vunpack.c.0.s8 %v1031
    %v1033 = vperm.slane %v1025, %v1032
    %v1034 = vrot.slane %v1005, 4
    %v1035 = vsel %vm426, %v1034, %v993
    %v1036 = vrot.slane %v993, 4
    %v1037 = vsel %vm426, %v1005, %v1036
    %v1039 = vunpack.c.l.s4 1934713408
    %v1040 = vunpack.c.0.s8 %v1039
    %v1041 = vperm.slane %v1035, %v1040
    %v1043 = vunpack.c.l.s4 1934713408
    %v1044 = vunpack.c.0.s8 %v1043
    %v1045 = vperm.slane %v1037, %v1044
    %v1046 = vrot.slane %v1009, 4
    %v1047 = vsel %vm426, %v1046, %v997
    %v1048 = vrot.slane %v997, 4
    %v1049 = vsel %vm426, %v1009, %v1048
    %v1051 = vunpack.c.l.s4 1934713408
    %v1052 = vunpack.c.0.s8 %v1051
    %v1053 = vperm.slane %v1047, %v1052
    %v1055 = vunpack.c.l.s4 1934713408
    %v1056 = vunpack.c.0.s8 %v1055
    %v1057 = vperm.slane %v1049, %v1056
    %v1058 = vrot.slane %v1029, 4
    %v1059 = vsel %vm426, %v1058, %v1017
    %v1060 = vrot.slane %v1017, 4
    %v1061 = vsel %vm426, %v1029, %v1060
    %v1063 = vunpack.c.l.s4 1934713408
    %v1064 = vunpack.c.0.s8 %v1063
    %v1065 = vperm.slane %v1059, %v1064
    %v1067 = vunpack.c.l.s4 1934713408
    %v1068 = vunpack.c.0.s8 %v1067
    %v1069 = vperm.slane %v1061, %v1068
    %v1070 = vrot.slane %v1033, 4
    %v1071 = vsel %vm426, %v1070, %v1021
    %v1072 = vrot.slane %v1021, 4
    %v1073 = vsel %vm426, %v1033, %v1072
    %v1075 = vunpack.c.l.s4 1934713408
    %v1076 = vunpack.c.0.s8 %v1075
    %v1077 = vperm.slane %v1071, %v1076
    %v1079 = vunpack.c.l.s4 1934713408
    %v1080 = vunpack.c.0.s8 %v1079
    %v1081 = vperm.slane %v1073, %v1080
    %v1082 = vrot.slane %v1065, 4
    %v1083 = vsel %vm426, %v1082, %v1041
    %v1084 = vrot.slane %v1041, 4
    %v1085 = vsel %vm426, %v1065, %v1084
    %v1086 = vrot.slane %v1069, 4
    %v1087 = vsel %vm426, %v1086, %v1045
    %v1088 = vrot.slane %v1045, 4
    %v1089 = vsel %vm426, %v1069, %v1088
    %v1090 = vrot.slane %v1077, 4
    %v1091 = vsel %vm426, %v1090, %v1053
    %v1092 = vrot.slane %v1053, 4
    %v1093 = vsel %vm426, %v1077, %v1092
    %v1094 = vrot.slane %v1081, 4
    %v1095 = vsel %vm426, %v1094, %v1057
    %v1096 = vrot.slane %v1057, 4
    %v1097 = vsel %vm426, %v1081, %v1096
    %v1098 = vrot.slane %v194, 4
    %v1099 = vsel %vm426, %v1098, %v188
    %v1100 = vrot.slane %v188, 4
    %v1101 = vsel %vm426, %v194, %v1100
    %v1103 = vunpack.c.l.s4 1983009808
    %v1104 = vunpack.c.0.s8 %v1103
    %v1105 = vperm.slane %v1099, %v1104
    %v1107 = vunpack.c.l.s4 1983009808
    %v1108 = vunpack.c.0.s8 %v1107
    %v1109 = vperm.slane %v1101, %v1108
    %v1110 = vrot.slane %v197, 4
    %v1111 = vsel %vm426, %v1110, %v191
    %v1112 = vrot.slane %v191, 4
    %v1113 = vsel %vm426, %v197, %v1112
    %v1115 = vunpack.c.l.s4 1983009808
    %v1116 = vunpack.c.0.s8 %v1115
    %v1117 = vperm.slane %v1111, %v1116
    %v1119 = vunpack.c.l.s4 1983009808
    %v1120 = vunpack.c.0.s8 %v1119
    %v1121 = vperm.slane %v1113, %v1120
    %v1122 = vrot.slane %v206, 4
    %v1123 = vsel %vm426, %v1122, %v200
    %v1124 = vrot.slane %v200, 4
    %v1125 = vsel %vm426, %v206, %v1124
    %v1127 = vunpack.c.l.s4 1983009808
    %v1128 = vunpack.c.0.s8 %v1127
    %v1129 = vperm.slane %v1123, %v1128
    %v1131 = vunpack.c.l.s4 1983009808
    %v1132 = vunpack.c.0.s8 %v1131
    %v1133 = vperm.slane %v1125, %v1132
    %v1134 = vrot.slane %v209, 4
    %v1135 = vsel %vm426, %v1134, %v203
    %v1136 = vrot.slane %v203, 4
    %v1137 = vsel %vm426, %v209, %v1136
    %v1139 = vunpack.c.l.s4 1983009808
    %v1140 = vunpack.c.0.s8 %v1139
    %v1141 = vperm.slane %v1135, %v1140
    %v1143 = vunpack.c.l.s4 1983009808
    %v1144 = vunpack.c.0.s8 %v1143
    %v1145 = vperm.slane %v1137, %v1144
    %v1146 = vrot.slane %v1117, 4
    %v1147 = vsel %vm426, %v1146, %v1105
    %v1148 = vrot.slane %v1105, 4
    %v1149 = vsel %vm426, %v1117, %v1148
    %v1151 = vunpack.c.l.s4 1934713408
    %v1152 = vunpack.c.0.s8 %v1151
    %v1153 = vperm.slane %v1147, %v1152
    %v1155 = vunpack.c.l.s4 1934713408
    %v1156 = vunpack.c.0.s8 %v1155
    %v1157 = vperm.slane %v1149, %v1156
    %v1158 = vrot.slane %v1121, 4
    %v1159 = vsel %vm426, %v1158, %v1109
    %v1160 = vrot.slane %v1109, 4
    %v1161 = vsel %vm426, %v1121, %v1160
    %v1163 = vunpack.c.l.s4 1934713408
    %v1164 = vunpack.c.0.s8 %v1163
    %v1165 = vperm.slane %v1159, %v1164
    %v1167 = vunpack.c.l.s4 1934713408
    %v1168 = vunpack.c.0.s8 %v1167
    %v1169 = vperm.slane %v1161, %v1168
    %v1170 = vrot.slane %v1141, 4
    %v1171 = vsel %vm426, %v1170, %v1129
    %v1172 = vrot.slane %v1129, 4
    %v1173 = vsel %vm426, %v1141, %v1172
    %v1175 = vunpack.c.l.s4 1934713408
    %v1176 = vunpack.c.0.s8 %v1175
    %v1177 = vperm.slane %v1171, %v1176
    %v1179 = vunpack.c.l.s4 1934713408
    %v1180 = vunpack.c.0.s8 %v1179
    %v1181 = vperm.slane %v1173, %v1180
    %v1182 = vrot.slane %v1145, 4
    %v1183 = vsel %vm426, %v1182, %v1133
    %v1184 = vrot.slane %v1133, 4
    %v1185 = vsel %vm426, %v1145, %v1184
    %v1187 = vunpack.c.l.s4 1934713408
    %v1188 = vunpack.c.0.s8 %v1187
    %v1189 = vperm.slane %v1183, %v1188
    %v1191 = vunpack.c.l.s4 1934713408
    %v1192 = vunpack.c.0.s8 %v1191
    %v1193 = vperm.slane %v1185, %v1192
    %v1194 = vrot.slane %v1177, 4
    %v1195 = vsel %vm426, %v1194, %v1153
    %v1196 = vrot.slane %v1153, 4
    %v1197 = vsel %vm426, %v1177, %v1196
    %v1198 = vrot.slane %v1181, 4
    %v1199 = vsel %vm426, %v1198, %v1157
    %v1200 = vrot.slane %v1157, 4
    %v1201 = vsel %vm426, %v1181, %v1200
    %v1202 = vrot.slane %v1189, 4
    %v1203 = vsel %vm426, %v1202, %v1165
    %v1204 = vrot.slane %v1165, 4
    %v1205 = vsel %vm426, %v1189, %v1204
    %v1206 = vrot.slane %v1193, 4
    %v1207 = vsel %vm426, %v1206, %v1169
    %v1208 = vrot.slane %v1169, 4
    %v1209 = vsel %vm426, %v1193, %v1208
    %v1210 = vrot.slane %v218, 4
    %v1211 = vsel %vm426, %v1210, %v212
    %v1212 = vrot.slane %v212, 4
    %v1213 = vsel %vm426, %v218, %v1212
    %v1215 = vunpack.c.l.s4 1983009808
    %v1216 = vunpack.c.0.s8 %v1215
    %v1217 = vperm.slane %v1211, %v1216
    %v1219 = vunpack.c.l.s4 1983009808
    %v1220 = vunpack.c.0.s8 %v1219
    %v1221 = vperm.slane %v1213, %v1220
    %v1222 = vrot.slane %v221, 4
    %v1223 = vsel %vm426, %v1222, %v215
    %v1224 = vrot.slane %v215, 4
    %v1225 = vsel %vm426, %v221, %v1224
    %v1227 = vunpack.c.l.s4 1983009808
    %v1228 = vunpack.c.0.s8 %v1227
    %v1229 = vperm.slane %v1223, %v1228
    %v1231 = vunpack.c.l.s4 1983009808
    %v1232 = vunpack.c.0.s8 %v1231
    %v1233 = vperm.slane %v1225, %v1232
    %v1234 = vrot.slane %v230, 4
    %v1235 = vsel %vm426, %v1234, %v224
    %v1236 = vrot.slane %v224, 4
    %v1237 = vsel %vm426, %v230, %v1236
    %v1239 = vunpack.c.l.s4 1983009808
    %v1240 = vunpack.c.0.s8 %v1239
    %v1241 = vperm.slane %v1235, %v1240
    %v1243 = vunpack.c.l.s4 1983009808
    %v1244 = vunpack.c.0.s8 %v1243
    %v1245 = vperm.slane %v1237, %v1244
    %v1246 = vrot.slane %v233, 4
    %v1247 = vsel %vm426, %v1246, %v227
    %v1248 = vrot.slane %v227, 4
    %v1249 = vsel %vm426, %v233, %v1248
    %v1251 = vunpack.c.l.s4 1983009808
    %v1252 = vunpack.c.0.s8 %v1251
    %v1253 = vperm.slane %v1247, %v1252
    %v1255 = vunpack.c.l.s4 1983009808
    %v1256 = vunpack.c.0.s8 %v1255
    %v1257 = vperm.slane %v1249, %v1256
    %v1258 = vrot.slane %v1229, 4
    %v1259 = vsel %vm426, %v1258, %v1217
    %v1260 = vrot.slane %v1217, 4
    %v1261 = vsel %vm426, %v1229, %v1260
    %v1263 = vunpack.c.l.s4 1934713408
    %v1264 = vunpack.c.0.s8 %v1263
    %v1265 = vperm.slane %v1259, %v1264
    %v1267 = vunpack.c.l.s4 1934713408
    %v1268 = vunpack.c.0.s8 %v1267
    %v1269 = vperm.slane %v1261, %v1268
    %v1270 = vrot.slane %v1233, 4
    %v1271 = vsel %vm426, %v1270, %v1221
    %v1272 = vrot.slane %v1221, 4
    %v1273 = vsel %vm426, %v1233, %v1272
    %v1275 = vunpack.c.l.s4 1934713408
    %v1276 = vunpack.c.0.s8 %v1275
    %v1277 = vperm.slane %v1271, %v1276
    %v1279 = vunpack.c.l.s4 1934713408
    %v1280 = vunpack.c.0.s8 %v1279
    %v1281 = vperm.slane %v1273, %v1280
    %v1282 = vrot.slane %v1253, 4
    %v1283 = vsel %vm426, %v1282, %v1241
    %v1284 = vrot.slane %v1241, 4
    %v1285 = vsel %vm426, %v1253, %v1284
    %v1287 = vunpack.c.l.s4 1934713408
    %v1288 = vunpack.c.0.s8 %v1287
    %v1289 = vperm.slane %v1283, %v1288
    %v1291 = vunpack.c.l.s4 1934713408
    %v1292 = vunpack.c.0.s8 %v1291
    %v1293 = vperm.slane %v1285, %v1292
    %v1294 = vrot.slane %v1257, 4
    %v1295 = vsel %vm426, %v1294, %v1245
    %v1296 = vrot.slane %v1245, 4
    %v1297 = vsel %vm426, %v1257, %v1296
    %v1299 = vunpack.c.l.s4 1934713408
    %v1300 = vunpack.c.0.s8 %v1299
    %v1301 = vperm.slane %v1295, %v1300
    %v1303 = vunpack.c.l.s4 1934713408
    %v1304 = vunpack.c.0.s8 %v1303
    %v1305 = vperm.slane %v1297, %v1304
    %v1306 = vrot.slane %v1289, 4
    %v1307 = vsel %vm426, %v1306, %v1265
    %v1308 = vrot.slane %v1265, 4
    %v1309 = vsel %vm426, %v1289, %v1308
    %v1310 = vrot.slane %v1293, 4
    %v1311 = vsel %vm426, %v1310, %v1269
    %v1312 = vrot.slane %v1269, 4
    %v1313 = vsel %vm426, %v1293, %v1312
    %v1314 = vrot.slane %v1301, 4
    %v1315 = vsel %vm426, %v1314, %v1277
    %v1316 = vrot.slane %v1277, 4
    %v1317 = vsel %vm426, %v1301, %v1316
    %v1318 = vrot.slane %v1305, 4
    %v1319 = vsel %vm426, %v1318, %v1281
    %v1320 = vrot.slane %v1281, 4
    %v1321 = vsel %vm426, %v1305, %v1320
    %v1322 = vrot.slane %v240, 4
    %v1323 = vsel %vm426, %v1322, %v44
    %v1324 = vrot.slane %v44, 4
    %v1325 = vsel %vm426, %v240, %v1324
    %v1327 = vunpack.c.l.s4 1983009808
    %v1328 = vunpack.c.0.s8 %v1327
    %v1329 = vperm.slane %v1323, %v1328
    %v1331 = vunpack.c.l.s4 1983009808
    %v1332 = vunpack.c.0.s8 %v1331
    %v1333 = vperm.slane %v1325, %v1332
    %v1334 = vrot.slane %v243, 4
    %v1335 = vsel %vm426, %v1334, %v237
    %v1336 = vrot.slane %v237, 4
    %v1337 = vsel %vm426, %v243, %v1336
    %v1339 = vunpack.c.l.s4 1983009808
    %v1340 = vunpack.c.0.s8 %v1339
    %v1341 = vperm.slane %v1335, %v1340
    %v1343 = vunpack.c.l.s4 1983009808
    %v1344 = vunpack.c.0.s8 %v1343
    %v1345 = vperm.slane %v1337, %v1344
    %v1346 = vrot.slane %v252, 4
    %v1347 = vsel %vm426, %v1346, %v246
    %v1348 = vrot.slane %v246, 4
    %v1349 = vsel %vm426, %v252, %v1348
    %v1351 = vunpack.c.l.s4 1983009808
    %v1352 = vunpack.c.0.s8 %v1351
    %v1353 = vperm.slane %v1347, %v1352
    %v1355 = vunpack.c.l.s4 1983009808
    %v1356 = vunpack.c.0.s8 %v1355
    %v1357 = vperm.slane %v1349, %v1356
    %v1358 = vrot.slane %v255, 4
    %v1359 = vsel %vm426, %v1358, %v249
    %v1360 = vrot.slane %v249, 4
    %v1361 = vsel %vm426, %v255, %v1360
    %v1363 = vunpack.c.l.s4 1983009808
    %v1364 = vunpack.c.0.s8 %v1363
    %v1365 = vperm.slane %v1359, %v1364
    %v1367 = vunpack.c.l.s4 1983009808
    %v1368 = vunpack.c.0.s8 %v1367
    %v1369 = vperm.slane %v1361, %v1368
    %v1370 = vrot.slane %v1341, 4
    %v1371 = vsel %vm426, %v1370, %v1329
    %v1372 = vrot.slane %v1329, 4
    %v1373 = vsel %vm426, %v1341, %v1372
    %v1375 = vunpack.c.l.s4 1934713408
    %v1376 = vunpack.c.0.s8 %v1375
    %v1377 = vperm.slane %v1371, %v1376
    %v1379 = vunpack.c.l.s4 1934713408
    %v1380 = vunpack.c.0.s8 %v1379
    %v1381 = vperm.slane %v1373, %v1380
    %v1382 = vrot.slane %v1345, 4
    %v1383 = vsel %vm426, %v1382, %v1333
    %v1384 = vrot.slane %v1333, 4
    %v1385 = vsel %vm426, %v1345, %v1384
    %v1387 = vunpack.c.l.s4 1934713408
    %v1388 = vunpack.c.0.s8 %v1387
    %v1389 = vperm.slane %v1383, %v1388
    %v1391 = vunpack.c.l.s4 1934713408
    %v1392 = vunpack.c.0.s8 %v1391
    %v1393 = vperm.slane %v1385, %v1392
    %v1394 = vrot.slane %v1365, 4
    %v1395 = vsel %vm426, %v1394, %v1353
    %v1396 = vrot.slane %v1353, 4
    %v1397 = vsel %vm426, %v1365, %v1396
    %v1399 = vunpack.c.l.s4 1934713408
    %v1400 = vunpack.c.0.s8 %v1399
    %v1401 = vperm.slane %v1395, %v1400
    %v1403 = vunpack.c.l.s4 1934713408
    %v1404 = vunpack.c.0.s8 %v1403
    %v1405 = vperm.slane %v1397, %v1404
    %v1406 = vrot.slane %v1369, 4
    %v1407 = vsel %vm426, %v1406, %v1357
    %v1408 = vrot.slane %v1357, 4
    %v1409 = vsel %vm426, %v1369, %v1408
    %v1411 = vunpack.c.l.s4 1934713408
    %v1412 = vunpack.c.0.s8 %v1411
    %v1413 = vperm.slane %v1407, %v1412
    %v1415 = vunpack.c.l.s4 1934713408
    %v1416 = vunpack.c.0.s8 %v1415
    %v1417 = vperm.slane %v1409, %v1416
    %v1418 = vrot.slane %v1401, 4
    %v1419 = vsel %vm426, %v1418, %v1377
    %v1420 = vrot.slane %v1377, 4
    %v1421 = vsel %vm426, %v1401, %v1420
    %v1422 = vrot.slane %v1405, 4
    %v1423 = vsel %vm426, %v1422, %v1381
    %v1424 = vrot.slane %v1381, 4
    %v1425 = vsel %vm426, %v1405, %v1424
    %v1426 = vrot.slane %v1413, 4
    %v1427 = vsel %vm426, %v1426, %v1389
    %v1428 = vrot.slane %v1389, 4
    %v1429 = vsel %vm426, %v1413, %v1428
    %v1430 = vrot.slane %v1417, 4
    %v1431 = vsel %vm426, %v1430, %v1393
    %v1432 = vrot.slane %v1393, 4
    %v1433 = vsel %vm426, %v1417, %v1432
    %v1434 = vrot.slane %v264, 4
    %v1435 = vsel %vm426, %v1434, %v258
    %v1436 = vrot.slane %v258, 4
    %v1437 = vsel %vm426, %v264, %v1436
    %v1439 = vunpack.c.l.s4 1983009808
    %v1440 = vunpack.c.0.s8 %v1439
    %v1441 = vperm.slane %v1435, %v1440
    %v1443 = vunpack.c.l.s4 1983009808
    %v1444 = vunpack.c.0.s8 %v1443
    %v1445 = vperm.slane %v1437, %v1444
    %v1446 = vrot.slane %v267, 4
    %v1447 = vsel %vm426, %v1446, %v261
    %v1448 = vrot.slane %v261, 4
    %v1449 = vsel %vm426, %v267, %v1448
    %v1451 = vunpack.c.l.s4 1983009808
    %v1452 = vunpack.c.0.s8 %v1451
    %v1453 = vperm.slane %v1447, %v1452
    %v1455 = vunpack.c.l.s4 1983009808
    %v1456 = vunpack.c.0.s8 %v1455
    %v1457 = vperm.slane %v1449, %v1456
    %v1458 = vrot.slane %v276, 4
    %v1459 = vsel %vm426, %v1458, %v270
    %v1460 = vrot.slane %v270, 4
    %v1461 = vsel %vm426, %v276, %v1460
    %v1463 = vunpack.c.l.s4 1983009808
    %v1464 = vunpack.c.0.s8 %v1463
    %v1465 = vperm.slane %v1459, %v1464
    %v1467 = vunpack.c.l.s4 1983009808
    %v1468 = vunpack.c.0.s8 %v1467
    %v1469 = vperm.slane %v1461, %v1468
    %v1470 = vrot.slane %v279, 4
    %v1471 = vsel %vm426, %v1470, %v273
    %v1472 = vrot.slane %v273, 4
    %v1473 = vsel %vm426, %v279, %v1472
    %v1475 = vunpack.c.l.s4 1983009808
    %v1476 = vunpack.c.0.s8 %v1475
    %v1477 = vperm.slane %v1471, %v1476
    %v1479 = vunpack.c.l.s4 1983009808
    %v1480 = vunpack.c.0.s8 %v1479
    %v1481 = vperm.slane %v1473, %v1480
    %v1482 = vrot.slane %v1453, 4
    %v1483 = vsel %vm426, %v1482, %v1441
    %v1484 = vrot.slane %v1441, 4
    %v1485 = vsel %vm426, %v1453, %v1484
    %v1487 = vunpack.c.l.s4 1934713408
    %v1488 = vunpack.c.0.s8 %v1487
    %v1489 = vperm.slane %v1483, %v1488
    %v1491 = vunpack.c.l.s4 1934713408
    %v1492 = vunpack.c.0.s8 %v1491
    %v1493 = vperm.slane %v1485, %v1492
    %v1494 = vrot.slane %v1457, 4
    %v1495 = vsel %vm426, %v1494, %v1445
    %v1496 = vrot.slane %v1445, 4
    %v1497 = vsel %vm426, %v1457, %v1496
    %v1499 = vunpack.c.l.s4 1934713408
    %v1500 = vunpack.c.0.s8 %v1499
    %v1501 = vperm.slane %v1495, %v1500
    %v1503 = vunpack.c.l.s4 1934713408
    %v1504 = vunpack.c.0.s8 %v1503
    %v1505 = vperm.slane %v1497, %v1504
    %v1506 = vrot.slane %v1477, 4
    %v1507 = vsel %vm426, %v1506, %v1465
    %v1508 = vrot.slane %v1465, 4
    %v1509 = vsel %vm426, %v1477, %v1508
    %v1511 = vunpack.c.l.s4 1934713408
    %v1512 = vunpack.c.0.s8 %v1511
    %v1513 = vperm.slane %v1507, %v1512
    %v1515 = vunpack.c.l.s4 1934713408
    %v1516 = vunpack.c.0.s8 %v1515
    %v1517 = vperm.slane %v1509, %v1516
    %v1518 = vrot.slane %v1481, 4
    %v1519 = vsel %vm426, %v1518, %v1469
    %v1520 = vrot.slane %v1469, 4
    %v1521 = vsel %vm426, %v1481, %v1520
    %v1523 = vunpack.c.l.s4 1934713408
    %v1524 = vunpack.c.0.s8 %v1523
    %v1525 = vperm.slane %v1519, %v1524
    %v1527 = vunpack.c.l.s4 1934713408
    %v1528 = vunpack.c.0.s8 %v1527
    %v1529 = vperm.slane %v1521, %v1528
    %v1530 = vrot.slane %v1513, 4
    %v1531 = vsel %vm426, %v1530, %v1489
    %v1532 = vrot.slane %v1489, 4
    %v1533 = vsel %vm426, %v1513, %v1532
    %v1534 = vrot.slane %v1517, 4
    %v1535 = vsel %vm426, %v1534, %v1493
    %v1536 = vrot.slane %v1493, 4
    %v1537 = vsel %vm426, %v1517, %v1536
    %v1538 = vrot.slane %v1525, 4
    %v1539 = vsel %vm426, %v1538, %v1501
    %v1540 = vrot.slane %v1501, 4
    %v1541 = vsel %vm426, %v1525, %v1540
    %v1542 = vrot.slane %v1529, 4
    %v1543 = vsel %vm426, %v1542, %v1505
    %v1544 = vrot.slane %v1505, 4
    %v1545 = vsel %vm426, %v1529, %v1544
    %v1546 = vrot.slane %v288, 4
    %v1547 = vsel %vm426, %v1546, %v282
    %v1548 = vrot.slane %v282, 4
    %v1549 = vsel %vm426, %v288, %v1548
    %v1551 = vunpack.c.l.s4 1983009808
    %v1552 = vunpack.c.0.s8 %v1551
    %v1553 = vperm.slane %v1547, %v1552
    %v1555 = vunpack.c.l.s4 1983009808
    %v1556 = vunpack.c.0.s8 %v1555
    %v1557 = vperm.slane %v1549, %v1556
    %v1558 = vrot.slane %v291, 4
    %v1559 = vsel %vm426, %v1558, %v285
    %v1560 = vrot.slane %v285, 4
    %v1561 = vsel %vm426, %v291, %v1560
    %v1563 = vunpack.c.l.s4 1983009808
    %v1564 = vunpack.c.0.s8 %v1563
    %v1565 = vperm.slane %v1559, %v1564
    %v1567 = vunpack.c.l.s4 1983009808
    %v1568 = vunpack.c.0.s8 %v1567
    %v1569 = vperm.slane %v1561, %v1568
    %v1570 = vrot.slane %v300, 4
    %v1571 = vsel %vm426, %v1570, %v294
    %v1572 = vrot.slane %v294, 4
    %v1573 = vsel %vm426, %v300, %v1572
    %v1575 = vunpack.c.l.s4 1983009808
    %v1576 = vunpack.c.0.s8 %v1575
    %v1577 = vperm.slane %v1571, %v1576
    %v1579 = vunpack.c.l.s4 1983009808
    %v1580 = vunpack.c.0.s8 %v1579
    %v1581 = vperm.slane %v1573, %v1580
    %v1582 = vrot.slane %v303, 4
    %v1583 = vsel %vm426, %v1582, %v297
    %v1584 = vrot.slane %v297, 4
    %v1585 = vsel %vm426, %v303, %v1584
    %v1587 = vunpack.c.l.s4 1983009808
    %v1588 = vunpack.c.0.s8 %v1587
    %v1589 = vperm.slane %v1583, %v1588
    %v1591 = vunpack.c.l.s4 1983009808
    %v1592 = vunpack.c.0.s8 %v1591
    %v1593 = vperm.slane %v1585, %v1592
    %v1594 = vrot.slane %v1565, 4
    %v1595 = vsel %vm426, %v1594, %v1553
    %v1596 = vrot.slane %v1553, 4
    %v1597 = vsel %vm426, %v1565, %v1596
    %v1599 = vunpack.c.l.s4 1934713408
    %v1600 = vunpack.c.0.s8 %v1599
    %v1601 = vperm.slane %v1595, %v1600
    %v1603 = vunpack.c.l.s4 1934713408
    %v1604 = vunpack.c.0.s8 %v1603
    %v1605 = vperm.slane %v1597, %v1604
    %v1606 = vrot.slane %v1569, 4
    %v1607 = vsel %vm426, %v1606, %v1557
    %v1608 = vrot.slane %v1557, 4
    %v1609 = vsel %vm426, %v1569, %v1608
    %v1611 = vunpack.c.l.s4 1934713408
    %v1612 = vunpack.c.0.s8 %v1611
    %v1613 = vperm.slane %v1607, %v1612
    %v1615 = vunpack.c.l.s4 1934713408
    %v1616 = vunpack.c.0.s8 %v1615
    %v1617 = vperm.slane %v1609, %v1616
    %v1618 = vrot.slane %v1589, 4
    %v1619 = vsel %vm426, %v1618, %v1577
    %v1620 = vrot.slane %v1577, 4
    %v1621 = vsel %vm426, %v1589, %v1620
    %v1623 = vunpack.c.l.s4 1934713408
    %v1624 = vunpack.c.0.s8 %v1623
    %v1625 = vperm.slane %v1619, %v1624
    %v1627 = vunpack.c.l.s4 1934713408
    %v1628 = vunpack.c.0.s8 %v1627
    %v1629 = vperm.slane %v1621, %v1628
    %v1630 = vrot.slane %v1593, 4
    %v1631 = vsel %vm426, %v1630, %v1581
    %v1632 = vrot.slane %v1581, 4
    %v1633 = vsel %vm426, %v1593, %v1632
    %v1635 = vunpack.c.l.s4 1934713408
    %v1636 = vunpack.c.0.s8 %v1635
    %v1637 = vperm.slane %v1631, %v1636
    %v1639 = vunpack.c.l.s4 1934713408
    %v1640 = vunpack.c.0.s8 %v1639
    %v1641 = vperm.slane %v1633, %v1640
    %v1642 = vrot.slane %v1625, 4
    %v1643 = vsel %vm426, %v1642, %v1601
    %v1644 = vrot.slane %v1601, 4
    %v1645 = vsel %vm426, %v1625, %v1644
    %v1646 = vrot.slane %v1629, 4
    %v1647 = vsel %vm426, %v1646, %v1605
    %v1648 = vrot.slane %v1605, 4
    %v1649 = vsel %vm426, %v1629, %v1648
    %v1650 = vrot.slane %v1637, 4
    %v1651 = vsel %vm426, %v1650, %v1613
    %v1652 = vrot.slane %v1613, 4
    %v1653 = vsel %vm426, %v1637, %v1652
    %v1654 = vrot.slane %v1641, 4
    %v1655 = vsel %vm426, %v1654, %v1617
    %v1656 = vrot.slane %v1617, 4
    %v1657 = vsel %vm426, %v1641, %v1656
    %v1658 = vrot.slane %v312, 4
    %v1659 = vsel %vm426, %v1658, %v306
    %v1660 = vrot.slane %v306, 4
    %v1661 = vsel %vm426, %v312, %v1660
    %v1663 = vunpack.c.l.s4 1983009808
    %v1664 = vunpack.c.0.s8 %v1663
    %v1665 = vperm.slane %v1659, %v1664
    %v1667 = vunpack.c.l.s4 1983009808
    %v1668 = vunpack.c.0.s8 %v1667
    %v1669 = vperm.slane %v1661, %v1668
    %v1670 = vrot.slane %v315, 4
    %v1671 = vsel %vm426, %v1670, %v309
    %v1672 = vrot.slane %v309, 4
    %v1673 = vsel %vm426, %v315, %v1672
    %v1675 = vunpack.c.l.s4 1983009808
    %v1676 = vunpack.c.0.s8 %v1675
    %v1677 = vperm.slane %v1671, %v1676
    %v1679 = vunpack.c.l.s4 1983009808
    %v1680 = vunpack.c.0.s8 %v1679
    %v1681 = vperm.slane %v1673, %v1680
    %v1682 = vrot.slane %v324, 4
    %v1683 = vsel %vm426, %v1682, %v318
    %v1684 = vrot.slane %v318, 4
    %v1685 = vsel %vm426, %v324, %v1684
    %v1687 = vunpack.c.l.s4 1983009808
    %v1688 = vunpack.c.0.s8 %v1687
    %v1689 = vperm.slane %v1683, %v1688
    %v1691 = vunpack.c.l.s4 1983009808
    %v1692 = vunpack.c.0.s8 %v1691
    %v1693 = vperm.slane %v1685, %v1692
    %v1694 = vrot.slane %v327, 4
    %v1695 = vsel %vm426, %v1694, %v321
    %v1696 = vrot.slane %v321, 4
    %v1697 = vsel %vm426, %v327, %v1696
    %v1699 = vunpack.c.l.s4 1983009808
    %v1700 = vunpack.c.0.s8 %v1699
    %v1701 = vperm.slane %v1695, %v1700
    %v1703 = vunpack.c.l.s4 1983009808
    %v1704 = vunpack.c.0.s8 %v1703
    %v1705 = vperm.slane %v1697, %v1704
    %v1706 = vrot.slane %v1677, 4
    %v1707 = vsel %vm426, %v1706, %v1665
    %v1708 = vrot.slane %v1665, 4
    %v1709 = vsel %vm426, %v1677, %v1708
    %v1711 = vunpack.c.l.s4 1934713408
    %v1712 = vunpack.c.0.s8 %v1711
    %v1713 = vperm.slane %v1707, %v1712
    %v1715 = vunpack.c.l.s4 1934713408
    %v1716 = vunpack.c.0.s8 %v1715
    %v1717 = vperm.slane %v1709, %v1716
    %v1718 = vrot.slane %v1681, 4
    %v1719 = vsel %vm426, %v1718, %v1669
    %v1720 = vrot.slane %v1669, 4
    %v1721 = vsel %vm426, %v1681, %v1720
    %v1723 = vunpack.c.l.s4 1934713408
    %v1724 = vunpack.c.0.s8 %v1723
    %v1725 = vperm.slane %v1719, %v1724
    %v1727 = vunpack.c.l.s4 1934713408
    %v1728 = vunpack.c.0.s8 %v1727
    %v1729 = vperm.slane %v1721, %v1728
    %v1730 = vrot.slane %v1701, 4
    %v1731 = vsel %vm426, %v1730, %v1689
    %v1732 = vrot.slane %v1689, 4
    %v1733 = vsel %vm426, %v1701, %v1732
    %v1735 = vunpack.c.l.s4 1934713408
    %v1736 = vunpack.c.0.s8 %v1735
    %v1737 = vperm.slane %v1731, %v1736
    %v1739 = vunpack.c.l.s4 1934713408
    %v1740 = vunpack.c.0.s8 %v1739
    %v1741 = vperm.slane %v1733, %v1740
    %v1742 = vrot.slane %v1705, 4
    %v1743 = vsel %vm426, %v1742, %v1693
    %v1744 = vrot.slane %v1693, 4
    %v1745 = vsel %vm426, %v1705, %v1744
    %v1747 = vunpack.c.l.s4 1934713408
    %v1748 = vunpack.c.0.s8 %v1747
    %v1749 = vperm.slane %v1743, %v1748
    %v1751 = vunpack.c.l.s4 1934713408
    %v1752 = vunpack.c.0.s8 %v1751
    %v1753 = vperm.slane %v1745, %v1752
    %v1754 = vrot.slane %v1737, 4
    %v1755 = vsel %vm426, %v1754, %v1713
    %v1756 = vrot.slane %v1713, 4
    %v1757 = vsel %vm426, %v1737, %v1756
    %v1758 = vrot.slane %v1741, 4
    %v1759 = vsel %vm426, %v1758, %v1717
    %v1760 = vrot.slane %v1717, 4
    %v1761 = vsel %vm426, %v1741, %v1760
    %v1762 = vrot.slane %v1749, 4
    %v1763 = vsel %vm426, %v1762, %v1725
    %v1764 = vrot.slane %v1725, 4
    %v1765 = vsel %vm426, %v1749, %v1764
    %v1766 = vrot.slane %v1753, 4
    %v1767 = vsel %vm426, %v1766, %v1729
    %v1768 = vrot.slane %v1729, 4
    %v1769 = vsel %vm426, %v1753, %v1768
    %v1770 = vrot.slane %v336, 4
    %v1771 = vsel %vm426, %v1770, %v330
    %v1772 = vrot.slane %v330, 4
    %v1773 = vsel %vm426, %v336, %v1772
    %v1775 = vunpack.c.l.s4 1983009808
    %v1776 = vunpack.c.0.s8 %v1775
    %v1777 = vperm.slane %v1771, %v1776
    %v1779 = vunpack.c.l.s4 1983009808
    %v1780 = vunpack.c.0.s8 %v1779
    %v1781 = vperm.slane %v1773, %v1780
    %v1782 = vrot.slane %v339, 4
    %v1783 = vsel %vm426, %v1782, %v333
    %v1784 = vrot.slane %v333, 4
    %v1785 = vsel %vm426, %v339, %v1784
    %v1787 = vunpack.c.l.s4 1983009808
    %v1788 = vunpack.c.0.s8 %v1787
    %v1789 = vperm.slane %v1783, %v1788
    %v1791 = vunpack.c.l.s4 1983009808
    %v1792 = vunpack.c.0.s8 %v1791
    %v1793 = vperm.slane %v1785, %v1792
    %v1794 = vrot.slane %v348, 4
    %v1795 = vsel %vm426, %v1794, %v342
    %v1796 = vrot.slane %v342, 4
    %v1797 = vsel %vm426, %v348, %v1796
    %v1799 = vunpack.c.l.s4 1983009808
    %v1800 = vunpack.c.0.s8 %v1799
    %v1801 = vperm.slane %v1795, %v1800
    %v1803 = vunpack.c.l.s4 1983009808
    %v1804 = vunpack.c.0.s8 %v1803
    %v1805 = vperm.slane %v1797, %v1804
    %v1806 = vrot.slane %v351, 4
    %v1807 = vsel %vm426, %v1806, %v345
    %v1808 = vrot.slane %v345, 4
    %v1809 = vsel %vm426, %v351, %v1808
    %v1811 = vunpack.c.l.s4 1983009808
    %v1812 = vunpack.c.0.s8 %v1811
    %v1813 = vperm.slane %v1807, %v1812
    %v1815 = vunpack.c.l.s4 1983009808
    %v1816 = vunpack.c.0.s8 %v1815
    %v1817 = vperm.slane %v1809, %v1816
    %v1818 = vrot.slane %v1789, 4
    %v1819 = vsel %vm426, %v1818, %v1777
    %v1820 = vrot.slane %v1777, 4
    %v1821 = vsel %vm426, %v1789, %v1820
    %v1823 = vunpack.c.l.s4 1934713408
    %v1824 = vunpack.c.0.s8 %v1823
    %v1825 = vperm.slane %v1819, %v1824
    %v1827 = vunpack.c.l.s4 1934713408
    %v1828 = vunpack.c.0.s8 %v1827
    %v1829 = vperm.slane %v1821, %v1828
    %v1830 = vrot.slane %v1793, 4
    %v1831 = vsel %vm426, %v1830, %v1781
    %v1832 = vrot.slane %v1781, 4
    %v1833 = vsel %vm426, %v1793, %v1832
    %v1835 = vunpack.c.l.s4 1934713408
    %v1836 = vunpack.c.0.s8 %v1835
    %v1837 = vperm.slane %v1831, %v1836
    %v1839 = vunpack.c.l.s4 1934713408
    %v1840 = vunpack.c.0.s8 %v1839
    %v1841 = vperm.slane %v1833, %v1840
    %v1842 = vrot.slane %v1813, 4
    %v1843 = vsel %vm426, %v1842, %v1801
    %v1844 = vrot.slane %v1801, 4
    %v1845 = vsel %vm426, %v1813, %v1844
    %v1847 = vunpack.c.l.s4 1934713408
    %v1848 = vunpack.c.0.s8 %v1847
    %v1849 = vperm.slane %v1843, %v1848
    %v1851 = vunpack.c.l.s4 1934713408
    %v1852 = vunpack.c.0.s8 %v1851
    %v1853 = vperm.slane %v1845, %v1852
    %v1854 = vrot.slane %v1817, 4
    %v1855 = vsel %vm426, %v1854, %v1805
    %v1856 = vrot.slane %v1805, 4
    %v1857 = vsel %vm426, %v1817, %v1856
    %v1859 = vunpack.c.l.s4 1934713408
    %v1860 = vunpack.c.0.s8 %v1859
    %v1861 = vperm.slane %v1855, %v1860
    %v1863 = vunpack.c.l.s4 1934713408
    %v1864 = vunpack.c.0.s8 %v1863
    %v1865 = vperm.slane %v1857, %v1864
    %v1866 = vrot.slane %v1849, 4
    %v1867 = vsel %vm426, %v1866, %v1825
    %v1868 = vrot.slane %v1825, 4
    %v1869 = vsel %vm426, %v1849, %v1868
    %v1870 = vrot.slane %v1853, 4
    %v1871 = vsel %vm426, %v1870, %v1829
    %v1872 = vrot.slane %v1829, 4
    %v1873 = vsel %vm426, %v1853, %v1872
    %v1874 = vrot.slane %v1861, 4
    %v1875 = vsel %vm426, %v1874, %v1837
    %v1876 = vrot.slane %v1837, 4
    %v1877 = vsel %vm426, %v1861, %v1876
    %v1878 = vrot.slane %v1865, 4
    %v1879 = vsel %vm426, %v1878, %v1841
    %v1880 = vrot.slane %v1841, 4
    %v1881 = vsel %vm426, %v1865, %v1880
    %v1882 = vrot.slane %v360, 4
    %v1883 = vsel %vm426, %v1882, %v354
    %v1884 = vrot.slane %v354, 4
    %v1885 = vsel %vm426, %v360, %v1884
    %v1887 = vunpack.c.l.s4 1983009808
    %v1888 = vunpack.c.0.s8 %v1887
    %v1889 = vperm.slane %v1883, %v1888
    %v1891 = vunpack.c.l.s4 1983009808
    %v1892 = vunpack.c.0.s8 %v1891
    %v1893 = vperm.slane %v1885, %v1892
    %v1894 = vrot.slane %v363, 4
    %v1895 = vsel %vm426, %v1894, %v357
    %v1896 = vrot.slane %v357, 4
    %v1897 = vsel %vm426, %v363, %v1896
    %v1899 = vunpack.c.l.s4 1983009808
    %v1900 = vunpack.c.0.s8 %v1899
    %v1901 = vperm.slane %v1895, %v1900
    %v1903 = vunpack.c.l.s4 1983009808
    %v1904 = vunpack.c.0.s8 %v1903
    %v1905 = vperm.slane %v1897, %v1904
    %v1906 = vrot.slane %v372, 4
    %v1907 = vsel %vm426, %v1906, %v366
    %v1908 = vrot.slane %v366, 4
    %v1909 = vsel %vm426, %v372, %v1908
    %v1911 = vunpack.c.l.s4 1983009808
    %v1912 = vunpack.c.0.s8 %v1911
    %v1913 = vperm.slane %v1907, %v1912
    %v1915 = vunpack.c.l.s4 1983009808
    %v1916 = vunpack.c.0.s8 %v1915
    %v1917 = vperm.slane %v1909, %v1916
    %v1918 = vrot.slane %v375, 4
    %v1919 = vsel %vm426, %v1918, %v369
    %v1920 = vrot.slane %v369, 4
    %v1921 = vsel %vm426, %v375, %v1920
    %v1923 = vunpack.c.l.s4 1983009808
    %v1924 = vunpack.c.0.s8 %v1923
    %v1925 = vperm.slane %v1919, %v1924
    %v1927 = vunpack.c.l.s4 1983009808
    %v1928 = vunpack.c.0.s8 %v1927
    %v1929 = vperm.slane %v1921, %v1928
    %v1930 = vrot.slane %v1901, 4
    %v1931 = vsel %vm426, %v1930, %v1889
    %v1932 = vrot.slane %v1889, 4
    %v1933 = vsel %vm426, %v1901, %v1932
    %v1935 = vunpack.c.l.s4 1934713408
    %v1936 = vunpack.c.0.s8 %v1935
    %v1937 = vperm.slane %v1931, %v1936
    %v1939 = vunpack.c.l.s4 1934713408
    %v1940 = vunpack.c.0.s8 %v1939
    %v1941 = vperm.slane %v1933, %v1940
    %v1942 = vrot.slane %v1905, 4
    %v1943 = vsel %vm426, %v1942, %v1893
    %v1944 = vrot.slane %v1893, 4
    %v1945 = vsel %vm426, %v1905, %v1944
    %v1947 = vunpack.c.l.s4 1934713408
    %v1948 = vunpack.c.0.s8 %v1947
    %v1949 = vperm.slane %v1943, %v1948
    %v1951 = vunpack.c.l.s4 1934713408
    %v1952 = vunpack.c.0.s8 %v1951
    %v1953 = vperm.slane %v1945, %v1952
    %v1954 = vrot.slane %v1925, 4
    %v1955 = vsel %vm426, %v1954, %v1913
    %v1956 = vrot.slane %v1913, 4
    %v1957 = vsel %vm426, %v1925, %v1956
    %v1959 = vunpack.c.l.s4 1934713408
    %v1960 = vunpack.c.0.s8 %v1959
    %v1961 = vperm.slane %v1955, %v1960
    %v1963 = vunpack.c.l.s4 1934713408
    %v1964 = vunpack.c.0.s8 %v1963
    %v1965 = vperm.slane %v1957, %v1964
    %v1966 = vrot.slane %v1929, 4
    %v1967 = vsel %vm426, %v1966, %v1917
    %v1968 = vrot.slane %v1917, 4
    %v1969 = vsel %vm426, %v1929, %v1968
    %v1971 = vunpack.c.l.s4 1934713408
    %v1972 = vunpack.c.0.s8 %v1971
    %v1973 = vperm.slane %v1967, %v1972
    %v1975 = vunpack.c.l.s4 1934713408
    %v1976 = vunpack.c.0.s8 %v1975
    %v1977 = vperm.slane %v1969, %v1976
    %v1978 = vrot.slane %v1961, 4
    %v1979 = vsel %vm426, %v1978, %v1937
    %v1980 = vrot.slane %v1937, 4
    %v1981 = vsel %vm426, %v1961, %v1980
    %v1982 = vrot.slane %v1965, 4
    %v1983 = vsel %vm426, %v1982, %v1941
    %v1984 = vrot.slane %v1941, 4
    %v1985 = vsel %vm426, %v1965, %v1984
    %v1986 = vrot.slane %v1973, 4
    %v1987 = vsel %vm426, %v1986, %v1949
    %v1988 = vrot.slane %v1949, 4
    %v1989 = vsel %vm426, %v1973, %v1988
    %v1990 = vrot.slane %v1977, 4
    %v1991 = vsel %vm426, %v1990, %v1953
    %v1992 = vrot.slane %v1953, 4
    %v1993 = vsel %vm426, %v1977, %v1992
    %v1994 = vrot.slane %v384, 4
    %v1995 = vsel %vm426, %v1994, %v378
    %v1996 = vrot.slane %v378, 4
    %v1997 = vsel %vm426, %v384, %v1996
    %v1999 = vunpack.c.l.s4 1983009808
    %v2000 = vunpack.c.0.s8 %v1999
    %v2001 = vperm.slane %v1995, %v2000
    %v2003 = vunpack.c.l.s4 1983009808
    %v2004 = vunpack.c.0.s8 %v2003
    %v2005 = vperm.slane %v1997, %v2004
    %v2006 = vrot.slane %v387, 4
    %v2007 = vsel %vm426, %v2006, %v381
    %v2008 = vrot.slane %v381, 4
    %v2009 = vsel %vm426, %v387, %v2008
    %v2011 = vunpack.c.l.s4 1983009808
    %v2012 = vunpack.c.0.s8 %v2011
    %v2013 = vperm.slane %v2007, %v2012
    %v2015 = vunpack.c.l.s4 1983009808
    %v2016 = vunpack.c.0.s8 %v2015
    %v2017 = vperm.slane %v2009, %v2016
    %v2018 = vrot.slane %v396, 4
    %v2019 = vsel %vm426, %v2018, %v390
    %v2020 = vrot.slane %v390, 4
    %v2021 = vsel %vm426, %v396, %v2020
    %v2023 = vunpack.c.l.s4 1983009808
    %v2024 = vunpack.c.0.s8 %v2023
    %v2025 = vperm.slane %v2019, %v2024
    %v2027 = vunpack.c.l.s4 1983009808
    %v2028 = vunpack.c.0.s8 %v2027
    %v2029 = vperm.slane %v2021, %v2028
    %v2030 = vrot.slane %v399, 4
    %v2031 = vsel %vm426, %v2030, %v393
    %v2032 = vrot.slane %v393, 4
    %v2033 = vsel %vm426, %v399, %v2032
    %v2035 = vunpack.c.l.s4 1983009808
    %v2036 = vunpack.c.0.s8 %v2035
    %v2037 = vperm.slane %v2031, %v2036
    %v2039 = vunpack.c.l.s4 1983009808
    %v2040 = vunpack.c.0.s8 %v2039
    %v2041 = vperm.slane %v2033, %v2040
    %v2042 = vrot.slane %v2013, 4
    %v2043 = vsel %vm426, %v2042, %v2001
    %v2044 = vrot.slane %v2001, 4
    %v2045 = vsel %vm426, %v2013, %v2044
    %v2047 = vunpack.c.l.s4 1934713408
    %v2048 = vunpack.c.0.s8 %v2047
    %v2049 = vperm.slane %v2043, %v2048
    %v2051 = vunpack.c.l.s4 1934713408
    %v2052 = vunpack.c.0.s8 %v2051
    %v2053 = vperm.slane %v2045, %v2052
    %v2054 = vrot.slane %v2017, 4
    %v2055 = vsel %vm426, %v2054, %v2005
    %v2056 = vrot.slane %v2005, 4
    %v2057 = vsel %vm426, %v2017, %v2056
    %v2059 = vunpack.c.l.s4 1934713408
    %v2060 = vunpack.c.0.s8 %v2059
    %v2061 = vperm.slane %v2055, %v2060
    %v2063 = vunpack.c.l.s4 1934713408
    %v2064 = vunpack.c.0.s8 %v2063
    %v2065 = vperm.slane %v2057, %v2064
    %v2066 = vrot.slane %v2037, 4
    %v2067 = vsel %vm426, %v2066, %v2025
    %v2068 = vrot.slane %v2025, 4
    %v2069 = vsel %vm426, %v2037, %v2068
    %v2071 = vunpack.c.l.s4 1934713408
    %v2072 = vunpack.c.0.s8 %v2071
    %v2073 = vperm.slane %v2067, %v2072
    %v2075 = vunpack.c.l.s4 1934713408
    %v2076 = vunpack.c.0.s8 %v2075
    %v2077 = vperm.slane %v2069, %v2076
    %v2078 = vrot.slane %v2041, 4
    %v2079 = vsel %vm426, %v2078, %v2029
    %v2080 = vrot.slane %v2029, 4
    %v2081 = vsel %vm426, %v2041, %v2080
    %v2083 = vunpack.c.l.s4 1934713408
    %v2084 = vunpack.c.0.s8 %v2083
    %v2085 = vperm.slane %v2079, %v2084
    %v2087 = vunpack.c.l.s4 1934713408
    %v2088 = vunpack.c.0.s8 %v2087
    %v2089 = vperm.slane %v2081, %v2088
    %v2090 = vrot.slane %v2073, 4
    %v2091 = vsel %vm426, %v2090, %v2049
    %v2092 = vrot.slane %v2049, 4
    %v2093 = vsel %vm426, %v2073, %v2092
    %v2094 = vrot.slane %v2077, 4
    %v2095 = vsel %vm426, %v2094, %v2053
    %v2096 = vrot.slane %v2053, 4
    %v2097 = vsel %vm426, %v2077, %v2096
    %v2098 = vrot.slane %v2085, 4
    %v2099 = vsel %vm426, %v2098, %v2061
    %v2100 = vrot.slane %v2061, 4
    %v2101 = vsel %vm426, %v2085, %v2100
    %v2102 = vrot.slane %v2089, 4
    %v2103 = vsel %vm426, %v2102, %v2065
    %v2104 = vrot.slane %v2065, 4
    %v2105 = vsel %vm426, %v2089, %v2104
    %v2106 = vrot.slane %v408, 4
    %v2107 = vsel %vm426, %v2106, %v402
    %v2108 = vrot.slane %v402, 4
    %v2109 = vsel %vm426, %v408, %v2108
    %v2111 = vunpack.c.l.s4 1983009808
    %v2112 = vunpack.c.0.s8 %v2111
    %v2113 = vperm.slane %v2107, %v2112
    %v2115 = vunpack.c.l.s4 1983009808
    %v2116 = vunpack.c.0.s8 %v2115
    %v2117 = vperm.slane %v2109, %v2116
    %v2118 = vrot.slane %v411, 4
    %v2119 = vsel %vm426, %v2118, %v405
    %v2120 = vrot.slane %v405, 4
    %v2121 = vsel %vm426, %v411, %v2120
    %v2123 = vunpack.c.l.s4 1983009808
    %v2124 = vunpack.c.0.s8 %v2123
    %v2125 = vperm.slane %v2119, %v2124
    %v2127 = vunpack.c.l.s4 1983009808
    %v2128 = vunpack.c.0.s8 %v2127
    %v2129 = vperm.slane %v2121, %v2128
    %v2130 = vrot.slane %v420, 4
    %v2131 = vsel %vm426, %v2130, %v414
    %v2132 = vrot.slane %v414, 4
    %v2133 = vsel %vm426, %v420, %v2132
    %v2135 = vunpack.c.l.s4 1983009808
    %v2136 = vunpack.c.0.s8 %v2135
    %v2137 = vperm.slane %v2131, %v2136
    %v2139 = vunpack.c.l.s4 1983009808
    %v2140 = vunpack.c.0.s8 %v2139
    %v2141 = vperm.slane %v2133, %v2140
    %v2142 = vrot.slane %v423, 4
    %v2143 = vsel %vm426, %v2142, %v417
    %v2144 = vrot.slane %v417, 4
    %v2145 = vsel %vm426, %v423, %v2144
    %v2147 = vunpack.c.l.s4 1983009808
    %v2148 = vunpack.c.0.s8 %v2147
    %v2149 = vperm.slane %v2143, %v2148
    %v2151 = vunpack.c.l.s4 1983009808
    %v2152 = vunpack.c.0.s8 %v2151
    %v2153 = vperm.slane %v2145, %v2152
    %v2154 = vrot.slane %v2125, 4
    %v2155 = vsel %vm426, %v2154, %v2113
    %v2156 = vrot.slane %v2113, 4
    %v2157 = vsel %vm426, %v2125, %v2156
    %v2159 = vunpack.c.l.s4 1934713408
    %v2160 = vunpack.c.0.s8 %v2159
    %v2161 = vperm.slane %v2155, %v2160
    %v2163 = vunpack.c.l.s4 1934713408
    %v2164 = vunpack.c.0.s8 %v2163
    %v2165 = vperm.slane %v2157, %v2164
    %v2166 = vrot.slane %v2129, 4
    %v2167 = vsel %vm426, %v2166, %v2117
    %v2168 = vrot.slane %v2117, 4
    %v2169 = vsel %vm426, %v2129, %v2168
    %v2171 = vunpack.c.l.s4 1934713408
    %v2172 = vunpack.c.0.s8 %v2171
    %v2173 = vperm.slane %v2167, %v2172
    %v2175 = vunpack.c.l.s4 1934713408
    %v2176 = vunpack.c.0.s8 %v2175
    %v2177 = vperm.slane %v2169, %v2176
    %v2178 = vrot.slane %v2149, 4
    %v2179 = vsel %vm426, %v2178, %v2137
    %v2180 = vrot.slane %v2137, 4
    %v2181 = vsel %vm426, %v2149, %v2180
    %v2183 = vunpack.c.l.s4 1934713408
    %v2184 = vunpack.c.0.s8 %v2183
    %v2185 = vperm.slane %v2179, %v2184
    %v2187 = vunpack.c.l.s4 1934713408
    %v2188 = vunpack.c.0.s8 %v2187
    %v2189 = vperm.slane %v2181, %v2188
    %v2190 = vrot.slane %v2153, 4
    %v2191 = vsel %vm426, %v2190, %v2141
    %v2192 = vrot.slane %v2141, 4
    %v2193 = vsel %vm426, %v2153, %v2192
    %v2195 = vunpack.c.l.s4 1934713408
    %v2196 = vunpack.c.0.s8 %v2195
    %v2197 = vperm.slane %v2191, %v2196
    %v2199 = vunpack.c.l.s4 1934713408
    %v2200 = vunpack.c.0.s8 %v2199
    %v2201 = vperm.slane %v2193, %v2200
    %v2202 = vrot.slane %v2185, 4
    %v2203 = vsel %vm426, %v2202, %v2161
    %v2204 = vrot.slane %v2161, 4
    %v2205 = vsel %vm426, %v2185, %v2204
    %v2206 = vrot.slane %v2189, 4
    %v2207 = vsel %vm426, %v2206, %v2165
    %v2208 = vrot.slane %v2165, 4
    %v2209 = vsel %vm426, %v2189, %v2208
    %v2210 = vrot.slane %v2197, 4
    %v2211 = vsel %vm426, %v2210, %v2173
    %v2212 = vrot.slane %v2173, 4
    %v2213 = vsel %vm426, %v2197, %v2212
    %v2214 = vrot.slane %v2201, 4
    %v2215 = vsel %vm426, %v2214, %v2177
    %v2216 = vrot.slane %v2177, 4
    %v2217 = vsel %vm426, %v2201, %v2216
    %vm2218 = vcmask 15360
    %v2219 = vsel %vm2218, %v523, 0.0
    %2220 = vadd.xlane.f32.xlu0 %v2219
    %v2221 = vpop.xlane.xlu0 %2220
    %v2222 = vsel %vm2218, %v635, 0.0
    %2223 = vadd.xlane.f32.xlu0 %v2222
    %v2224 = vpop.xlane.xlu0 %2223
    %v2225 = vsel %vm2218, %v747, 0.0
    %2226 = vadd.xlane.f32.xlu0 %v2225
    %v2227 = vpop.xlane.xlu0 %2226
    %v2228 = vsel %vm2218, %v859, 0.0
    %2229 = vadd.xlane.f32.xlu0 %v2228
    %v2230 = vpop.xlane.xlu0 %2229
    %v2231 = vsel %vm2218, %v971, 0.0
    %2232 = vadd.xlane.f32.xlu0 %v2231
    %v2233 = vpop.xlane.xlu0 %2232
    %v2234 = vsel %vm2218, %v1083, 0.0
    %2235 = vadd.xlane.f32.xlu0 %v2234
    %v2236 = vpop.xlane.xlu0 %2235
    %v2237 = vsel %vm2218, %v1195, 0.0
    %2238 = vadd.xlane.f32.xlu0 %v2237
    %v2239 = vpop.xlane.xlu0 %2238
    %v2240 = vsel %vm2218, %v1307, 0.0
    %2241 = vadd.xlane.f32.xlu0 %v2240
    %v2242 = vpop.xlane.xlu0 %2241
    %v2243 = vsel %vm2218, %v1419, 0.0
    %2244 = vadd.xlane.f32.xlu0 %v2243
    %v2245 = vpop.xlane.xlu0 %2244
    %v2246 = vsel %vm2218, %v1531, 0.0
    %2247 = vadd.xlane.f32.xlu0 %v2246
    %v2248 = vpop.xlane.xlu0 %2247
    %v2249 = vsel %vm2218, %v1643, 0.0
    %2250 = vadd.xlane.f32.xlu0 %v2249
    %v2251 = vpop.xlane.xlu0 %2250
    %v2252 = vsel %vm2218, %v1755, 0.0
    %2253 = vadd.xlane.f32.xlu0 %v2252
    %v2254 = vpop.xlane.xlu0 %2253
    %v2255 = vsel %vm2218, %v1867, 0.0
    %2256 = vadd.xlane.f32.xlu0 %v2255
    %v2257 = vpop.xlane.xlu0 %2256
    %v2258 = vsel %vm2218, %v1979, 0.0
    %2259 = vadd.xlane.f32.xlu0 %v2258
    %v2260 = vpop.xlane.xlu0 %2259
    %v2261 = vsel %vm2218, %v2091, 0.0
    %2262 = vadd.xlane.f32.xlu0 %v2261
    %v2263 = vpop.xlane.xlu0 %2262
    %v2264 = vsel %vm2218, %v2203, 0.0
    %2265 = vadd.xlane.f32.xlu0 %v2264
    %v2266 = vpop.xlane.xlu0 %2265
    %v2267 = vsel %vm2218, %v525, 0.0
    %2268 = vadd.xlane.f32.xlu0 %v2267
    %v2269 = vpop.xlane.xlu0 %2268
    %v2270 = vsel %vm2218, %v637, 0.0
    %2271 = vadd.xlane.f32.xlu0 %v2270
    %v2272 = vpop.xlane.xlu0 %2271
    %v2273 = vsel %vm2218, %v749, 0.0
    %2274 = vadd.xlane.f32.xlu0 %v2273
    %v2275 = vpop.xlane.xlu0 %2274
    %v2276 = vsel %vm2218, %v861, 0.0
    %2277 = vadd.xlane.f32.xlu0 %v2276
    %v2278 = vpop.xlane.xlu0 %2277
    %v2279 = vsel %vm2218, %v973, 0.0
    %2280 = vadd.xlane.f32.xlu0 %v2279
    %v2281 = vpop.xlane.xlu0 %2280
    %v2282 = vsel %vm2218, %v1085, 0.0
    %2283 = vadd.xlane.f32.xlu0 %v2282
    %v2284 = vpop.xlane.xlu0 %2283
    %v2285 = vsel %vm2218, %v1197, 0.0
    %2286 = vadd.xlane.f32.xlu0 %v2285
    %v2287 = vpop.xlane.xlu0 %2286
    %v2288 = vsel %vm2218, %v1309, 0.0
    %2289 = vadd.xlane.f32.xlu0 %v2288
    %v2290 = vpop.xlane.xlu0 %2289
    %v2291 = vsel %vm2218, %v1421, 0.0
    %2292 = vadd.xlane.f32.xlu0 %v2291
    %v2293 = vpop.xlane.xlu0 %2292
    %v2294 = vsel %vm2218, %v1533, 0.0
    %2295 = vadd.xlane.f32.xlu0 %v2294
    %v2296 = vpop.xlane.xlu0 %2295
    %v2297 = vsel %vm2218, %v1645, 0.0
    %2298 = vadd.xlane.f32.xlu0 %v2297
    %v2299 = vpop.xlane.xlu0 %2298
    %v2300 = vsel %vm2218, %v1757, 0.0
    %2301 = vadd.xlane.f32.xlu0 %v2300
    %v2302 = vpop.xlane.xlu0 %2301
    %v2303 = vsel %vm2218, %v1869, 0.0
    %2304 = vadd.xlane.f32.xlu0 %v2303
    %v2305 = vpop.xlane.xlu0 %2304
    %v2306 = vsel %vm2218, %v1981, 0.0
    %2307 = vadd.xlane.f32.xlu0 %v2306
    %v2308 = vpop.xlane.xlu0 %2307
    %v2309 = vsel %vm2218, %v2093, 0.0
    %2310 = vadd.xlane.f32.xlu0 %v2309
    %v2311 = vpop.xlane.xlu0 %2310
    %v2312 = vsel %vm2218, %v2205, 0.0
    %2313 = vadd.xlane.f32.xlu0 %v2312
    %v2314 = vpop.xlane.xlu0 %2313
    %v2315 = vsel %vm2218, %v527, 0.0
    %2316 = vadd.xlane.f32.xlu0 %v2315
    %v2317 = vpop.xlane.xlu0 %2316
    %v2318 = vsel %vm2218, %v639, 0.0
    %2319 = vadd.xlane.f32.xlu0 %v2318
    %v2320 = vpop.xlane.xlu0 %2319
    %v2321 = vsel %vm2218, %v751, 0.0
    %2322 = vadd.xlane.f32.xlu0 %v2321
    %v2323 = vpop.xlane.xlu0 %2322
    %v2324 = vsel %vm2218, %v863, 0.0
    %2325 = vadd.xlane.f32.xlu0 %v2324
    %v2326 = vpop.xlane.xlu0 %2325
    %v2327 = vsel %vm2218, %v975, 0.0
    %2328 = vadd.xlane.f32.xlu0 %v2327
    %v2329 = vpop.xlane.xlu0 %2328
    %v2330 = vsel %vm2218, %v1087, 0.0
    %2331 = vadd.xlane.f32.xlu0 %v2330
    %v2332 = vpop.xlane.xlu0 %2331
    %v2333 = vsel %vm2218, %v1199, 0.0
    %2334 = vadd.xlane.f32.xlu0 %v2333
    %v2335 = vpop.xlane.xlu0 %2334
    %v2336 = vsel %vm2218, %v1311, 0.0
    %2337 = vadd.xlane.f32.xlu0 %v2336
    %v2338 = vpop.xlane.xlu0 %2337
    %v2339 = vsel %vm2218, %v1423, 0.0
    %2340 = vadd.xlane.f32.xlu0 %v2339
    %v2341 = vpop.xlane.xlu0 %2340
    %v2342 = vsel %vm2218, %v1535, 0.0
    %2343 = vadd.xlane.f32.xlu0 %v2342
    %v2344 = vpop.xlane.xlu0 %2343
    %v2345 = vsel %vm2218, %v1647, 0.0
    %2346 = vadd.xlane.f32.xlu0 %v2345
    %v2347 = vpop.xlane.xlu0 %2346
    %v2348 = vsel %vm2218, %v1759, 0.0
    %2349 = vadd.xlane.f32.xlu0 %v2348
    %v2350 = vpop.xlane.xlu0 %2349
    %v2351 = vsel %vm2218, %v1871, 0.0
    %2352 = vadd.xlane.f32.xlu0 %v2351
    %v2353 = vpop.xlane.xlu0 %2352
    %v2354 = vsel %vm2218, %v1983, 0.0
    %2355 = vadd.xlane.f32.xlu0 %v2354
    %v2356 = vpop.xlane.xlu0 %2355
    %v2357 = vsel %vm2218, %v2095, 0.0
    %2358 = vadd.xlane.f32.xlu0 %v2357
    %v2359 = vpop.xlane.xlu0 %2358
    %v2360 = vsel %vm2218, %v2207, 0.0
    %2361 = vadd.xlane.f32.xlu0 %v2360
    %v2362 = vpop.xlane.xlu0 %2361
    %v2363 = vsel %vm2218, %v529, 0.0
    %2364 = vadd.xlane.f32.xlu0 %v2363
    %v2365 = vpop.xlane.xlu0 %2364
    %v2366 = vsel %vm2218, %v641, 0.0
    %2367 = vadd.xlane.f32.xlu0 %v2366
    %v2368 = vpop.xlane.xlu0 %2367
    %v2369 = vsel %vm2218, %v753, 0.0
    %2370 = vadd.xlane.f32.xlu0 %v2369
    %v2371 = vpop.xlane.xlu0 %2370
    %v2372 = vsel %vm2218, %v865, 0.0
    %2373 = vadd.xlane.f32.xlu0 %v2372
    %v2374 = vpop.xlane.xlu0 %2373
    %v2375 = vsel %vm2218, %v977, 0.0
    %2376 = vadd.xlane.f32.xlu0 %v2375
    %v2377 = vpop.xlane.xlu0 %2376
    %v2378 = vsel %vm2218, %v1089, 0.0
    %2379 = vadd.xlane.f32.xlu0 %v2378
    %v2380 = vpop.xlane.xlu0 %2379
    %v2381 = vsel %vm2218, %v1201, 0.0
    %2382 = vadd.xlane.f32.xlu0 %v2381
    %v2383 = vpop.xlane.xlu0 %2382
    %v2384 = vsel %vm2218, %v1313, 0.0
    %2385 = vadd.xlane.f32.xlu0 %v2384
    %v2386 = vpop.xlane.xlu0 %2385
    %v2387 = vsel %vm2218, %v1425, 0.0
    %2388 = vadd.xlane.f32.xlu0 %v2387
    %v2389 = vpop.xlane.xlu0 %2388
    %v2390 = vsel %vm2218, %v1537, 0.0
    %2391 = vadd.xlane.f32.xlu0 %v2390
    %v2392 = vpop.xlane.xlu0 %2391
    %v2393 = vsel %vm2218, %v1649, 0.0
    %2394 = vadd.xlane.f32.xlu0 %v2393
    %v2395 = vpop.xlane.xlu0 %2394
    %v2396 = vsel %vm2218, %v1761, 0.0
    %2397 = vadd.xlane.f32.xlu0 %v2396
    %v2398 = vpop.xlane.xlu0 %2397
    %v2399 = vsel %vm2218, %v1873, 0.0
    %2400 = vadd.xlane.f32.xlu0 %v2399
    %v2401 = vpop.xlane.xlu0 %2400
    %v2402 = vsel %vm2218, %v1985, 0.0
    %2403 = vadd.xlane.f32.xlu0 %v2402
    %v2404 = vpop.xlane.xlu0 %2403
    %v2405 = vsel %vm2218, %v2097, 0.0
    %2406 = vadd.xlane.f32.xlu0 %v2405
    %v2407 = vpop.xlane.xlu0 %2406
    %v2408 = vsel %vm2218, %v2209, 0.0
    %2409 = vadd.xlane.f32.xlu0 %v2408
    %v2410 = vpop.xlane.xlu0 %2409
    %v2411 = vsel %vm2218, %v531, 0.0
    %2412 = vadd.xlane.f32.xlu0 %v2411
    %v2413 = vpop.xlane.xlu0 %2412
    %v2414 = vsel %vm2218, %v643, 0.0
    %2415 = vadd.xlane.f32.xlu0 %v2414
    %v2416 = vpop.xlane.xlu0 %2415
    %v2417 = vsel %vm2218, %v755, 0.0
    %2418 = vadd.xlane.f32.xlu0 %v2417
    %v2419 = vpop.xlane.xlu0 %2418
    %v2420 = vsel %vm2218, %v867, 0.0
    %2421 = vadd.xlane.f32.xlu0 %v2420
    %v2422 = vpop.xlane.xlu0 %2421
    %v2423 = vsel %vm2218, %v979, 0.0
    %2424 = vadd.xlane.f32.xlu0 %v2423
    %v2425 = vpop.xlane.xlu0 %2424
    %v2426 = vsel %vm2218, %v1091, 0.0
    %2427 = vadd.xlane.f32.xlu0 %v2426
    %v2428 = vpop.xlane.xlu0 %2427
    %v2429 = vsel %vm2218, %v1203, 0.0
    %2430 = vadd.xlane.f32.xlu0 %v2429
    %v2431 = vpop.xlane.xlu0 %2430
    %v2432 = vsel %vm2218, %v1315, 0.0
    %2433 = vadd.xlane.f32.xlu0 %v2432
    %v2434 = vpop.xlane.xlu0 %2433
    %v2435 = vsel %vm2218, %v1427, 0.0
    %2436 = vadd.xlane.f32.xlu0 %v2435
    %v2437 = vpop.xlane.xlu0 %2436
    %v2438 = vsel %vm2218, %v1539, 0.0
    %2439 = vadd.xlane.f32.xlu0 %v2438
    %v2440 = vpop.xlane.xlu0 %2439
    %v2441 = vsel %vm2218, %v1651, 0.0
    %2442 = vadd.xlane.f32.xlu0 %v2441
    %v2443 = vpop.xlane.xlu0 %2442
    %v2444 = vsel %vm2218, %v1763, 0.0
    %2445 = vadd.xlane.f32.xlu0 %v2444
    %v2446 = vpop.xlane.xlu0 %2445
    %v2447 = vsel %vm2218, %v1875, 0.0
    %2448 = vadd.xlane.f32.xlu0 %v2447
    %v2449 = vpop.xlane.xlu0 %2448
    %v2450 = vsel %vm2218, %v1987, 0.0
    %2451 = vadd.xlane.f32.xlu0 %v2450
    %v2452 = vpop.xlane.xlu0 %2451
    %v2453 = vsel %vm2218, %v2099, 0.0
    %2454 = vadd.xlane.f32.xlu0 %v2453
    %v2455 = vpop.xlane.xlu0 %2454
    %v2456 = vsel %vm2218, %v2211, 0.0
    %2457 = vadd.xlane.f32.xlu0 %v2456
    %v2458 = vpop.xlane.xlu0 %2457
    %v2459 = vsel %vm2218, %v533, 0.0
    %2460 = vadd.xlane.f32.xlu0 %v2459
    %v2461 = vpop.xlane.xlu0 %2460
    %v2462 = vsel %vm2218, %v645, 0.0
    %2463 = vadd.xlane.f32.xlu0 %v2462
    %v2464 = vpop.xlane.xlu0 %2463
    %v2465 = vsel %vm2218, %v757, 0.0
    %2466 = vadd.xlane.f32.xlu0 %v2465
    %v2467 = vpop.xlane.xlu0 %2466
    %v2468 = vsel %vm2218, %v869, 0.0
    %2469 = vadd.xlane.f32.xlu0 %v2468
    %v2470 = vpop.xlane.xlu0 %2469
    %v2471 = vsel %vm2218, %v981, 0.0
    %2472 = vadd.xlane.f32.xlu0 %v2471
    %v2473 = vpop.xlane.xlu0 %2472
    %v2474 = vsel %vm2218, %v1093, 0.0
    %2475 = vadd.xlane.f32.xlu0 %v2474
    %v2476 = vpop.xlane.xlu0 %2475
    %v2477 = vsel %vm2218, %v1205, 0.0
    %2478 = vadd.xlane.f32.xlu0 %v2477
    %v2479 = vpop.xlane.xlu0 %2478
    %v2480 = vsel %vm2218, %v1317, 0.0
    %2481 = vadd.xlane.f32.xlu0 %v2480
    %v2482 = vpop.xlane.xlu0 %2481
    %v2483 = vsel %vm2218, %v1429, 0.0
    %2484 = vadd.xlane.f32.xlu0 %v2483
    %v2485 = vpop.xlane.xlu0 %2484
    %v2486 = vsel %vm2218, %v1541, 0.0
    %2487 = vadd.xlane.f32.xlu0 %v2486
    %v2488 = vpop.xlane.xlu0 %2487
    %v2489 = vsel %vm2218, %v1653, 0.0
    %2490 = vadd.xlane.f32.xlu0 %v2489
    %v2491 = vpop.xlane.xlu0 %2490
    %v2492 = vsel %vm2218, %v1765, 0.0
    %2493 = vadd.xlane.f32.xlu0 %v2492
    %v2494 = vpop.xlane.xlu0 %2493
    %v2495 = vsel %vm2218, %v1877, 0.0
    %2496 = vadd.xlane.f32.xlu0 %v2495
    %v2497 = vpop.xlane.xlu0 %2496
    %v2498 = vsel %vm2218, %v1989, 0.0
    %2499 = vadd.xlane.f32.xlu0 %v2498
    %v2500 = vpop.xlane.xlu0 %2499
    %v2501 = vsel %vm2218, %v2101, 0.0
    %2502 = vadd.xlane.f32.xlu0 %v2501
    %v2503 = vpop.xlane.xlu0 %2502
    %v2504 = vsel %vm2218, %v2213, 0.0
    %2505 = vadd.xlane.f32.xlu0 %v2504
    %v2506 = vpop.xlane.xlu0 %2505
    %v2507 = vsel %vm2218, %v535, 0.0
    %2508 = vadd.xlane.f32.xlu0 %v2507
    %v2509 = vpop.xlane.xlu0 %2508
    %v2510 = vsel %vm2218, %v647, 0.0
    %2511 = vadd.xlane.f32.xlu0 %v2510
    %v2512 = vpop.xlane.xlu0 %2511
    %v2513 = vsel %vm2218, %v759, 0.0
    %2514 = vadd.xlane.f32.xlu0 %v2513
    %v2515 = vpop.xlane.xlu0 %2514
    %v2516 = vsel %vm2218, %v871, 0.0
    %2517 = vadd.xlane.f32.xlu0 %v2516
    %v2518 = vpop.xlane.xlu0 %2517
    %v2519 = vsel %vm2218, %v983, 0.0
    %2520 = vadd.xlane.f32.xlu0 %v2519
    %v2521 = vpop.xlane.xlu0 %2520
    %v2522 = vsel %vm2218, %v1095, 0.0
    %2523 = vadd.xlane.f32.xlu0 %v2522
    %v2524 = vpop.xlane.xlu0 %2523
    %v2525 = vsel %vm2218, %v1207, 0.0
    %2526 = vadd.xlane.f32.xlu0 %v2525
    %v2527 = vpop.xlane.xlu0 %2526
    %v2528 = vsel %vm2218, %v1319, 0.0
    %2529 = vadd.xlane.f32.xlu0 %v2528
    %v2530 = vpop.xlane.xlu0 %2529
    %v2531 = vsel %vm2218, %v1431, 0.0
    %2532 = vadd.xlane.f32.xlu0 %v2531
    %v2533 = vpop.xlane.xlu0 %2532
    %v2534 = vsel %vm2218, %v1543, 0.0
    %2535 = vadd.xlane.f32.xlu0 %v2534
    %v2536 = vpop.xlane.xlu0 %2535
    %v2537 = vsel %vm2218, %v1655, 0.0
    %2538 = vadd.xlane.f32.xlu0 %v2537
    %v2539 = vpop.xlane.xlu0 %2538
    %v2540 = vsel %vm2218, %v1767, 0.0
    %2541 = vadd.xlane.f32.xlu0 %v2540
    %v2542 = vpop.xlane.xlu0 %2541
    %v2543 = vsel %vm2218, %v1879, 0.0
    %2544 = vadd.xlane.f32.xlu0 %v2543
    %v2545 = vpop.xlane.xlu0 %2544
    %v2546 = vsel %vm2218, %v1991, 0.0
    %2547 = vadd.xlane.f32.xlu0 %v2546
    %v2548 = vpop.xlane.xlu0 %2547
    %v2549 = vsel %vm2218, %v2103, 0.0
    %2550 = vadd.xlane.f32.xlu0 %v2549
    %v2551 = vpop.xlane.xlu0 %2550
    %v2552 = vsel %vm2218, %v2215, 0.0
    %2553 = vadd.xlane.f32.xlu0 %v2552
    %v2554 = vpop.xlane.xlu0 %2553
    %v2555 = vsel %vm2218, %v537, 0.0
    %2556 = vadd.xlane.f32.xlu0 %v2555
    %v2557 = vpop.xlane.xlu0 %2556
    %v2558 = vsel %vm2218, %v649, 0.0
    %2559 = vadd.xlane.f32.xlu0 %v2558
    %v2560 = vpop.xlane.xlu0 %2559
    %v2561 = vsel %vm2218, %v761, 0.0
    %2562 = vadd.xlane.f32.xlu0 %v2561
    %v2563 = vpop.xlane.xlu0 %2562
    %v2564 = vsel %vm2218, %v873, 0.0
    %2565 = vadd.xlane.f32.xlu0 %v2564
    %v2566 = vpop.xlane.xlu0 %2565
    %v2567 = vsel %vm2218, %v985, 0.0
    %2568 = vadd.xlane.f32.xlu0 %v2567
    %v2569 = vpop.xlane.xlu0 %2568
    %v2570 = vsel %vm2218, %v1097, 0.0
    %2571 = vadd.xlane.f32.xlu0 %v2570
    %v2572 = vpop.xlane.xlu0 %2571
    %v2573 = vsel %vm2218, %v1209, 0.0
    %2574 = vadd.xlane.f32.xlu0 %v2573
    %v2575 = vpop.xlane.xlu0 %2574
    %v2576 = vsel %vm2218, %v1321, 0.0
    %2577 = vadd.xlane.f32.xlu0 %v2576
    %v2578 = vpop.xlane.xlu0 %2577
    %v2579 = vsel %vm2218, %v1433, 0.0
    %2580 = vadd.xlane.f32.xlu0 %v2579
    %v2581 = vpop.xlane.xlu0 %2580
    %v2582 = vsel %vm2218, %v1545, 0.0
    %2583 = vadd.xlane.f32.xlu0 %v2582
    %v2584 = vpop.xlane.xlu0 %2583
    %v2585 = vsel %vm2218, %v1657, 0.0
    %2586 = vadd.xlane.f32.xlu0 %v2585
    %v2587 = vpop.xlane.xlu0 %2586
    %v2588 = vsel %vm2218, %v1769, 0.0
    %2589 = vadd.xlane.f32.xlu0 %v2588
    %v2590 = vpop.xlane.xlu0 %2589
    %v2591 = vsel %vm2218, %v1881, 0.0
    %2592 = vadd.xlane.f32.xlu0 %v2591
    %v2593 = vpop.xlane.xlu0 %2592
    %v2594 = vsel %vm2218, %v1993, 0.0
    %2595 = vadd.xlane.f32.xlu0 %v2594
    %v2596 = vpop.xlane.xlu0 %2595
    %v2597 = vsel %vm2218, %v2105, 0.0
    %2598 = vadd.xlane.f32.xlu0 %v2597
    %v2599 = vpop.xlane.xlu0 %2598
    %v2600 = vsel %vm2218, %v2217, 0.0
    %2601 = vadd.xlane.f32.xlu0 %v2600
    %v2602 = vpop.xlane.xlu0 %2601
    %v2603 = vmul.f32 %v2221, 0.5
    %v2604 = vmul.f32 %v2224, 0.5
    %v2605 = vmul.f32 %v2227, 0.5
    %v2606 = vmul.f32 %v2230, 0.5
    %v2607 = vmul.f32 %v2233, 0.5
    %v2608 = vmul.f32 %v2236, 0.5
    %v2609 = vmul.f32 %v2239, 0.5
    %v2610 = vmul.f32 %v2242, 0.5
    %v2611 = vmul.f32 %v2245, 0.5
    %v2612 = vmul.f32 %v2248, 0.5
    %v2613 = vmul.f32 %v2251, 0.5
    %v2614 = vmul.f32 %v2254, 0.5
    %v2615 = vmul.f32 %v2257, 0.5
    %v2616 = vmul.f32 %v2260, 0.5
    %v2617 = vmul.f32 %v2263, 0.5
    %v2618 = vmul.f32 %v2266, 0.5
    %v2619 = vmul.f32 %v2269, 0.5
    %v2620 = vmul.f32 %v2272, 0.5
    %v2621 = vmul.f32 %v2275, 0.5
    %v2622 = vmul.f32 %v2278, 0.5
    %v2623 = vmul.f32 %v2281, 0.5
    %v2624 = vmul.f32 %v2284, 0.5
    %v2625 = vmul.f32 %v2287, 0.5
    %v2626 = vmul.f32 %v2290, 0.5
    %v2627 = vmul.f32 %v2293, 0.5
    %v2628 = vmul.f32 %v2296, 0.5
    %v2629 = vmul.f32 %v2299, 0.5
    %v2630 = vmul.f32 %v2302, 0.5
    %v2631 = vmul.f32 %v2305, 0.5
    %v2632 = vmul.f32 %v2308, 0.5
    %v2633 = vmul.f32 %v2311, 0.5
    %v2634 = vmul.f32 %v2314, 0.5
    %v2635 = vmul.f32 %v2317, 0.5
    %v2636 = vmul.f32 %v2320, 0.5
    %v2637 = vmul.f32 %v2323, 0.5
    %v2638 = vmul.f32 %v2326, 0.5
    %v2639 = vmul.f32 %v2329, 0.5
    %v2640 = vmul.f32 %v2332, 0.5
    %v2641 = vmul.f32 %v2335, 0.5
    %v2642 = vmul.f32 %v2338, 0.5
    %v2643 = vmul.f32 %v2341, 0.5
    %v2644 = vmul.f32 %v2344, 0.5
    %v2645 = vmul.f32 %v2347, 0.5
    %v2646 = vmul.f32 %v2350, 0.5
    %v2647 = vmul.f32 %v2353, 0.5
    %v2648 = vmul.f32 %v2356, 0.5
    %v2649 = vmul.f32 %v2359, 0.5
    %v2650 = vmul.f32 %v2362, 0.5
    %v2651 = vmul.f32 %v2365, 0.5
    %v2652 = vmul.f32 %v2368, 0.5
    %v2653 = vmul.f32 %v2371, 0.5
    %v2654 = vmul.f32 %v2374, 0.5
    %v2655 = vmul.f32 %v2377, 0.5
    %v2656 = vmul.f32 %v2380, 0.5
    %v2657 = vmul.f32 %v2383, 0.5
    %v2658 = vmul.f32 %v2386, 0.5
    %v2659 = vmul.f32 %v2389, 0.5
    %v2660 = vmul.f32 %v2392, 0.5
    %v2661 = vmul.f32 %v2395, 0.5
    %v2662 = vmul.f32 %v2398, 0.5
    %v2663 = vmul.f32 %v2401, 0.5
    %v2664 = vmul.f32 %v2404, 0.5
    %v2665 = vmul.f32 %v2407, 0.5
    %v2666 = vmul.f32 %v2410, 0.5
    %v2667 = vmul.f32 %v2413, 0.5
    %v2668 = vmul.f32 %v2416, 0.5
    %v2669 = vmul.f32 %v2419, 0.5
    %v2670 = vmul.f32 %v2422, 0.5
    %v2671 = vmul.f32 %v2425, 0.5
    %v2672 = vmul.f32 %v2428, 0.5
    %v2673 = vmul.f32 %v2431, 0.5
    %v2674 = vmul.f32 %v2434, 0.5
    %v2675 = vmul.f32 %v2437, 0.5
    %v2676 = vmul.f32 %v2440, 0.5
    %v2677 = vmul.f32 %v2443, 0.5
    %v2678 = vmul.f32 %v2446, 0.5
    %v2679 = vmul.f32 %v2449, 0.5
    %v2680 = vmul.f32 %v2452, 0.5
    %v2681 = vmul.f32 %v2455, 0.5
    %v2682 = vmul.f32 %v2458, 0.5
    %v2683 = vmul.f32 %v2461, 0.5
    %v2684 = vmul.f32 %v2464, 0.5
    %v2685 = vmul.f32 %v2467, 0.5
    %v2686 = vmul.f32 %v2470, 0.5
    %v2687 = vmul.f32 %v2473, 0.5
    %v2688 = vmul.f32 %v2476, 0.5
    %v2689 = vmul.f32 %v2479, 0.5
    %v2690 = vmul.f32 %v2482, 0.5
    %v2691 = vmul.f32 %v2485, 0.5
    %v2692 = vmul.f32 %v2488, 0.5
    %v2693 = vmul.f32 %v2491, 0.5
    %v2694 = vmul.f32 %v2494, 0.5
    %v2695 = vmul.f32 %v2497, 0.5
    %v2696 = vmul.f32 %v2500, 0.5
    %v2697 = vmul.f32 %v2503, 0.5
    %v2698 = vmul.f32 %v2506, 0.5
    %v2699 = vmul.f32 %v2509, 0.5
    %v2700 = vmul.f32 %v2512, 0.5
    %v2701 = vmul.f32 %v2515, 0.5
    %v2702 = vmul.f32 %v2518, 0.5
    %v2703 = vmul.f32 %v2521, 0.5
    %v2704 = vmul.f32 %v2524, 0.5
    %v2705 = vmul.f32 %v2527, 0.5
    %v2706 = vmul.f32 %v2530, 0.5
    %v2707 = vmul.f32 %v2533, 0.5
    %v2708 = vmul.f32 %v2536, 0.5
    %v2709 = vmul.f32 %v2539, 0.5
    %v2710 = vmul.f32 %v2542, 0.5
    %v2711 = vmul.f32 %v2545, 0.5
    %v2712 = vmul.f32 %v2548, 0.5
    %v2713 = vmul.f32 %v2551, 0.5
    %v2714 = vmul.f32 %v2554, 0.5
    %v2715 = vmul.f32 %v2557, 0.5
    %v2716 = vmul.f32 %v2560, 0.5
    %v2717 = vmul.f32 %v2563, 0.5
    %v2718 = vmul.f32 %v2566, 0.5
    %v2719 = vmul.f32 %v2569, 0.5
    %v2720 = vmul.f32 %v2572, 0.5
    %v2721 = vmul.f32 %v2575, 0.5
    %v2722 = vmul.f32 %v2578, 0.5
    %v2723 = vmul.f32 %v2581, 0.5
    %v2724 = vmul.f32 %v2584, 0.5
    %v2725 = vmul.f32 %v2587, 0.5
    %v2726 = vmul.f32 %v2590, 0.5
    %v2727 = vmul.f32 %v2593, 0.5
    %v2728 = vmul.f32 %v2596, 0.5
    %v2729 = vmul.f32 %v2599, 0.5
    %v2730 = vmul.f32 %v2602, 0.5
    %v2731 = vsel %vm2218, %v523, -inf
    %2732 = vmax.xlane.f32.xlu0 %v2731
    %v2733 = vpop.xlane.xlu0 %2732
    %v2734 = vsel %vm2218, %v635, -inf
    %2735 = vmax.xlane.f32.xlu0 %v2734
    %v2736 = vpop.xlane.xlu0 %2735
    %v2737 = vsel %vm2218, %v747, -inf
    %2738 = vmax.xlane.f32.xlu0 %v2737
    %v2739 = vpop.xlane.xlu0 %2738
    %v2740 = vsel %vm2218, %v859, -inf
    %2741 = vmax.xlane.f32.xlu0 %v2740
    %v2742 = vpop.xlane.xlu0 %2741
    %v2743 = vsel %vm2218, %v971, -inf
    %2744 = vmax.xlane.f32.xlu0 %v2743
    %v2745 = vpop.xlane.xlu0 %2744
    %v2746 = vsel %vm2218, %v1083, -inf
    %2747 = vmax.xlane.f32.xlu0 %v2746
    %v2748 = vpop.xlane.xlu0 %2747
    %v2749 = vsel %vm2218, %v1195, -inf
    %2750 = vmax.xlane.f32.xlu0 %v2749
    %v2751 = vpop.xlane.xlu0 %2750
    %v2752 = vsel %vm2218, %v1307, -inf
    %2753 = vmax.xlane.f32.xlu0 %v2752
    %v2754 = vpop.xlane.xlu0 %2753
    %v2755 = vsel %vm2218, %v1419, -inf
    %2756 = vmax.xlane.f32.xlu0 %v2755
    %v2757 = vpop.xlane.xlu0 %2756
    %v2758 = vsel %vm2218, %v1531, -inf
    %2759 = vmax.xlane.f32.xlu0 %v2758
    %v2760 = vpop.xlane.xlu0 %2759
    %v2761 = vsel %vm2218, %v1643, -inf
    %2762 = vmax.xlane.f32.xlu0 %v2761
    %v2763 = vpop.xlane.xlu0 %2762
    %v2764 = vsel %vm2218, %v1755, -inf
    %2765 = vmax.xlane.f32.xlu0 %v2764
    %v2766 = vpop.xlane.xlu0 %2765
    %v2767 = vsel %vm2218, %v1867, -inf
    %2768 = vmax.xlane.f32.xlu0 %v2767
    %v2769 = vpop.xlane.xlu0 %2768
    %v2770 = vsel %vm2218, %v1979, -inf
    %2771 = vmax.xlane.f32.xlu0 %v2770
    %v2772 = vpop.xlane.xlu0 %2771
    %v2773 = vsel %vm2218, %v2091, -inf
    %2774 = vmax.xlane.f32.xlu0 %v2773
    %v2775 = vpop.xlane.xlu0 %2774
    %v2776 = vsel %vm2218, %v2203, -inf
    %2777 = vmax.xlane.f32.xlu0 %v2776
    %v2778 = vpop.xlane.xlu0 %2777
    %v2779 = vsel %vm2218, %v525, -inf
    %2780 = vmax.xlane.f32.xlu0 %v2779
    %v2781 = vpop.xlane.xlu0 %2780
    %v2782 = vsel %vm2218, %v637, -inf
    %2783 = vmax.xlane.f32.xlu0 %v2782
    %v2784 = vpop.xlane.xlu0 %2783
    %v2785 = vsel %vm2218, %v749, -inf
    %2786 = vmax.xlane.f32.xlu0 %v2785
    %v2787 = vpop.xlane.xlu0 %2786
    %v2788 = vsel %vm2218, %v861, -inf
    %2789 = vmax.xlane.f32.xlu0 %v2788
    %v2790 = vpop.xlane.xlu0 %2789
    %v2791 = vsel %vm2218, %v973, -inf
    %2792 = vmax.xlane.f32.xlu0 %v2791
    %v2793 = vpop.xlane.xlu0 %2792
    %v2794 = vsel %vm2218, %v1085, -inf
    %2795 = vmax.xlane.f32.xlu0 %v2794
    %v2796 = vpop.xlane.xlu0 %2795
    %v2797 = vsel %vm2218, %v1197, -inf
    %2798 = vmax.xlane.f32.xlu0 %v2797
    %v2799 = vpop.xlane.xlu0 %2798
    %v2800 = vsel %vm2218, %v1309, -inf
    %2801 = vmax.xlane.f32.xlu0 %v2800
    %v2802 = vpop.xlane.xlu0 %2801
    %v2803 = vsel %vm2218, %v1421, -inf
    %2804 = vmax.xlane.f32.xlu0 %v2803
    %v2805 = vpop.xlane.xlu0 %2804
    %v2806 = vsel %vm2218, %v1533, -inf
    %2807 = vmax.xlane.f32.xlu0 %v2806
    %v2808 = vpop.xlane.xlu0 %2807
    %v2809 = vsel %vm2218, %v1645, -inf
    %2810 = vmax.xlane.f32.xlu0 %v2809
    %v2811 = vpop.xlane.xlu0 %2810
    %v2812 = vsel %vm2218, %v1757, -inf
    %2813 = vmax.xlane.f32.xlu0 %v2812
    %v2814 = vpop.xlane.xlu0 %2813
    %v2815 = vsel %vm2218, %v1869, -inf
    %2816 = vmax.xlane.f32.xlu0 %v2815
    %v2817 = vpop.xlane.xlu0 %2816
    %v2818 = vsel %vm2218, %v1981, -inf
    %2819 = vmax.xlane.f32.xlu0 %v2818
    %v2820 = vpop.xlane.xlu0 %2819
    %v2821 = vsel %vm2218, %v2093, -inf
    %2822 = vmax.xlane.f32.xlu0 %v2821
    %v2823 = vpop.xlane.xlu0 %2822
    %v2824 = vsel %vm2218, %v2205, -inf
    %2825 = vmax.xlane.f32.xlu0 %v2824
    %v2826 = vpop.xlane.xlu0 %2825
    %v2827 = vsel %vm2218, %v527, -inf
    %2828 = vmax.xlane.f32.xlu0 %v2827
    %v2829 = vpop.xlane.xlu0 %2828
    %v2830 = vsel %vm2218, %v639, -inf
    %2831 = vmax.xlane.f32.xlu0 %v2830
    %v2832 = vpop.xlane.xlu0 %2831
    %v2833 = vsel %vm2218, %v751, -inf
    %2834 = vmax.xlane.f32.xlu0 %v2833
    %v2835 = vpop.xlane.xlu0 %2834
    %v2836 = vsel %vm2218, %v863, -inf
    %2837 = vmax.xlane.f32.xlu0 %v2836
    %v2838 = vpop.xlane.xlu0 %2837
    %v2839 = vsel %vm2218, %v975, -inf
    %2840 = vmax.xlane.f32.xlu0 %v2839
    %v2841 = vpop.xlane.xlu0 %2840
    %v2842 = vsel %vm2218, %v1087, -inf
    %2843 = vmax.xlane.f32.xlu0 %v2842
    %v2844 = vpop.xlane.xlu0 %2843
    %v2845 = vsel %vm2218, %v1199, -inf
    %2846 = vmax.xlane.f32.xlu0 %v2845
    %v2847 = vpop.xlane.xlu0 %2846
    %v2848 = vsel %vm2218, %v1311, -inf
    %2849 = vmax.xlane.f32.xlu0 %v2848
    %v2850 = vpop.xlane.xlu0 %2849
    %v2851 = vsel %vm2218, %v1423, -inf
    %2852 = vmax.xlane.f32.xlu0 %v2851
    %v2853 = vpop.xlane.xlu0 %2852
    %v2854 = vsel %vm2218, %v1535, -inf
    %2855 = vmax.xlane.f32.xlu0 %v2854
    %v2856 = vpop.xlane.xlu0 %2855
    %v2857 = vsel %vm2218, %v1647, -inf
    %2858 = vmax.xlane.f32.xlu0 %v2857
    %v2859 = vpop.xlane.xlu0 %2858
    %v2860 = vsel %vm2218, %v1759, -inf
    %2861 = vmax.xlane.f32.xlu0 %v2860
    %v2862 = vpop.xlane.xlu0 %2861
    %v2863 = vsel %vm2218, %v1871, -inf
    %2864 = vmax.xlane.f32.xlu0 %v2863
    %v2865 = vpop.xlane.xlu0 %2864
    %v2866 = vsel %vm2218, %v1983, -inf
    %2867 = vmax.xlane.f32.xlu0 %v2866
    %v2868 = vpop.xlane.xlu0 %2867
    %v2869 = vsel %vm2218, %v2095, -inf
    %2870 = vmax.xlane.f32.xlu0 %v2869
    %v2871 = vpop.xlane.xlu0 %2870
    %v2872 = vsel %vm2218, %v2207, -inf
    %2873 = vmax.xlane.f32.xlu0 %v2872
    %v2874 = vpop.xlane.xlu0 %2873
    %v2875 = vsel %vm2218, %v529, -inf
    %2876 = vmax.xlane.f32.xlu0 %v2875
    %v2877 = vpop.xlane.xlu0 %2876
    %v2878 = vsel %vm2218, %v641, -inf
    %2879 = vmax.xlane.f32.xlu0 %v2878
    %v2880 = vpop.xlane.xlu0 %2879
    %v2881 = vsel %vm2218, %v753, -inf
    %2882 = vmax.xlane.f32.xlu0 %v2881
    %v2883 = vpop.xlane.xlu0 %2882
    %v2884 = vsel %vm2218, %v865, -inf
    %2885 = vmax.xlane.f32.xlu0 %v2884
    %v2886 = vpop.xlane.xlu0 %2885
    %v2887 = vsel %vm2218, %v977, -inf
    %2888 = vmax.xlane.f32.xlu0 %v2887
    %v2889 = vpop.xlane.xlu0 %2888
    %v2890 = vsel %vm2218, %v1089, -inf
    %2891 = vmax.xlane.f32.xlu0 %v2890
    %v2892 = vpop.xlane.xlu0 %2891
    %v2893 = vsel %vm2218, %v1201, -inf
    %2894 = vmax.xlane.f32.xlu0 %v2893
    %v2895 = vpop.xlane.xlu0 %2894
    %v2896 = vsel %vm2218, %v1313, -inf
    %2897 = vmax.xlane.f32.xlu0 %v2896
    %v2898 = vpop.xlane.xlu0 %2897
    %v2899 = vsel %vm2218, %v1425, -inf
    %2900 = vmax.xlane.f32.xlu0 %v2899
    %v2901 = vpop.xlane.xlu0 %2900
    %v2902 = vsel %vm2218, %v1537, -inf
    %2903 = vmax.xlane.f32.xlu0 %v2902
    %v2904 = vpop.xlane.xlu0 %2903
    %v2905 = vsel %vm2218, %v1649, -inf
    %2906 = vmax.xlane.f32.xlu0 %v2905
    %v2907 = vpop.xlane.xlu0 %2906
    %v2908 = vsel %vm2218, %v1761, -inf
    %2909 = vmax.xlane.f32.xlu0 %v2908
    %v2910 = vpop.xlane.xlu0 %2909
    %v2911 = vsel %vm2218, %v1873, -inf
    %2912 = vmax.xlane.f32.xlu0 %v2911
    %v2913 = vpop.xlane.xlu0 %2912
    %v2914 = vsel %vm2218, %v1985, -inf
    %2915 = vmax.xlane.f32.xlu0 %v2914
    %v2916 = vpop.xlane.xlu0 %2915
    %v2917 = vsel %vm2218, %v2097, -inf
    %2918 = vmax.xlane.f32.xlu0 %v2917
    %v2919 = vpop.xlane.xlu0 %2918
    %v2920 = vsel %vm2218, %v2209, -inf
    %2921 = vmax.xlane.f32.xlu0 %v2920
    %v2922 = vpop.xlane.xlu0 %2921
    %v2923 = vsel %vm2218, %v531, -inf
    %2924 = vmax.xlane.f32.xlu0 %v2923
    %v2925 = vpop.xlane.xlu0 %2924
    %v2926 = vsel %vm2218, %v643, -inf
    %2927 = vmax.xlane.f32.xlu0 %v2926
    %v2928 = vpop.xlane.xlu0 %2927
    %v2929 = vsel %vm2218, %v755, -inf
    %2930 = vmax.xlane.f32.xlu0 %v2929
    %v2931 = vpop.xlane.xlu0 %2930
    %v2932 = vsel %vm2218, %v867, -inf
    %2933 = vmax.xlane.f32.xlu0 %v2932
    %v2934 = vpop.xlane.xlu0 %2933
    %v2935 = vsel %vm2218, %v979, -inf
    %2936 = vmax.xlane.f32.xlu0 %v2935
    %v2937 = vpop.xlane.xlu0 %2936
    %v2938 = vsel %vm2218, %v1091, -inf
    %2939 = vmax.xlane.f32.xlu0 %v2938
    %v2940 = vpop.xlane.xlu0 %2939
    %v2941 = vsel %vm2218, %v1203, -inf
    %2942 = vmax.xlane.f32.xlu0 %v2941
    %v2943 = vpop.xlane.xlu0 %2942
    %v2944 = vsel %vm2218, %v1315, -inf
    %2945 = vmax.xlane.f32.xlu0 %v2944
    %v2946 = vpop.xlane.xlu0 %2945
    %v2947 = vsel %vm2218, %v1427, -inf
    %2948 = vmax.xlane.f32.xlu0 %v2947
    %v2949 = vpop.xlane.xlu0 %2948
    %v2950 = vsel %vm2218, %v1539, -inf
    %2951 = vmax.xlane.f32.xlu0 %v2950
    %v2952 = vpop.xlane.xlu0 %2951
    %v2953 = vsel %vm2218, %v1651, -inf
    %2954 = vmax.xlane.f32.xlu0 %v2953
    %v2955 = vpop.xlane.xlu0 %2954
    %v2956 = vsel %vm2218, %v1763, -inf
    %2957 = vmax.xlane.f32.xlu0 %v2956
    %v2958 = vpop.xlane.xlu0 %2957
    %v2959 = vsel %vm2218, %v1875, -inf
    %2960 = vmax.xlane.f32.xlu0 %v2959
    %v2961 = vpop.xlane.xlu0 %2960
    %v2962 = vsel %vm2218, %v1987, -inf
    %2963 = vmax.xlane.f32.xlu0 %v2962
    %v2964 = vpop.xlane.xlu0 %2963
    %v2965 = vsel %vm2218, %v2099, -inf
    %2966 = vmax.xlane.f32.xlu0 %v2965
    %v2967 = vpop.xlane.xlu0 %2966
    %v2968 = vsel %vm2218, %v2211, -inf
    %2969 = vmax.xlane.f32.xlu0 %v2968
    %v2970 = vpop.xlane.xlu0 %2969
    %v2971 = vsel %vm2218, %v533, -inf
    %2972 = vmax.xlane.f32.xlu0 %v2971
    %v2973 = vpop.xlane.xlu0 %2972
    %v2974 = vsel %vm2218, %v645, -inf
    %2975 = vmax.xlane.f32.xlu0 %v2974
    %v2976 = vpop.xlane.xlu0 %2975
    %v2977 = vsel %vm2218, %v757, -inf
    %2978 = vmax.xlane.f32.xlu0 %v2977
    %v2979 = vpop.xlane.xlu0 %2978
    %v2980 = vsel %vm2218, %v869, -inf
    %2981 = vmax.xlane.f32.xlu0 %v2980
    %v2982 = vpop.xlane.xlu0 %2981
    %v2983 = vsel %vm2218, %v981, -inf
    %2984 = vmax.xlane.f32.xlu0 %v2983
    %v2985 = vpop.xlane.xlu0 %2984
    %v2986 = vsel %vm2218, %v1093, -inf
    %2987 = vmax.xlane.f32.xlu0 %v2986
    %v2988 = vpop.xlane.xlu0 %2987
    %v2989 = vsel %vm2218, %v1205, -inf
    %2990 = vmax.xlane.f32.xlu0 %v2989
    %v2991 = vpop.xlane.xlu0 %2990
    %v2992 = vsel %vm2218, %v1317, -inf
    %2993 = vmax.xlane.f32.xlu0 %v2992
    %v2994 = vpop.xlane.xlu0 %2993
    %v2995 = vsel %vm2218, %v1429, -inf
    %2996 = vmax.xlane.f32.xlu0 %v2995
    %v2997 = vpop.xlane.xlu0 %2996
    %v2998 = vsel %vm2218, %v1541, -inf
    %2999 = vmax.xlane.f32.xlu0 %v2998
    %v3000 = vpop.xlane.xlu0 %2999
    %v3001 = vsel %vm2218, %v1653, -inf
    %3002 = vmax.xlane.f32.xlu0 %v3001
    %v3003 = vpop.xlane.xlu0 %3002
    %v3004 = vsel %vm2218, %v1765, -inf
    %3005 = vmax.xlane.f32.xlu0 %v3004
    %v3006 = vpop.xlane.xlu0 %3005
    %v3007 = vsel %vm2218, %v1877, -inf
    %3008 = vmax.xlane.f32.xlu0 %v3007
    %v3009 = vpop.xlane.xlu0 %3008
    %v3010 = vsel %vm2218, %v1989, -inf
    %3011 = vmax.xlane.f32.xlu0 %v3010
    %v3012 = vpop.xlane.xlu0 %3011
    %v3013 = vsel %vm2218, %v2101, -inf
    %3014 = vmax.xlane.f32.xlu0 %v3013
    %v3015 = vpop.xlane.xlu0 %3014
    %v3016 = vsel %vm2218, %v2213, -inf
    %3017 = vmax.xlane.f32.xlu0 %v3016
    %v3018 = vpop.xlane.xlu0 %3017
    %v3019 = vsel %vm2218, %v535, -inf
    %3020 = vmax.xlane.f32.xlu0 %v3019
    %v3021 = vpop.xlane.xlu0 %3020
    %v3022 = vsel %vm2218, %v647, -inf
    %3023 = vmax.xlane.f32.xlu0 %v3022
    %v3024 = vpop.xlane.xlu0 %3023
    %v3025 = vsel %vm2218, %v759, -inf
    %3026 = vmax.xlane.f32.xlu0 %v3025
    %v3027 = vpop.xlane.xlu0 %3026
    %v3028 = vsel %vm2218, %v871, -inf
    %3029 = vmax.xlane.f32.xlu0 %v3028
    %v3030 = vpop.xlane.xlu0 %3029
    %v3031 = vsel %vm2218, %v983, -inf
    %3032 = vmax.xlane.f32.xlu0 %v3031
    %v3033 = vpop.xlane.xlu0 %3032
    %v3034 = vsel %vm2218, %v1095, -inf
    %3035 = vmax.xlane.f32.xlu0 %v3034
    %v3036 = vpop.xlane.xlu0 %3035
    %v3037 = vsel %vm2218, %v1207, -inf
    %3038 = vmax.xlane.f32.xlu0 %v3037
    %v3039 = vpop.xlane.xlu0 %3038
    %v3040 = vsel %vm2218, %v1319, -inf
    %3041 = vmax.xlane.f32.xlu0 %v3040
    %v3042 = vpop.xlane.xlu0 %3041
    %v3043 = vsel %vm2218, %v1431, -inf
    %3044 = vmax.xlane.f32.xlu0 %v3043
    %v3045 = vpop.xlane.xlu0 %3044
    %v3046 = vsel %vm2218, %v1543, -inf
    %3047 = vmax.xlane.f32.xlu0 %v3046
    %v3048 = vpop.xlane.xlu0 %3047
    %v3049 = vsel %vm2218, %v1655, -inf
    %3050 = vmax.xlane.f32.xlu0 %v3049
    %v3051 = vpop.xlane.xlu0 %3050
    %v3052 = vsel %vm2218, %v1767, -inf
    %3053 = vmax.xlane.f32.xlu0 %v3052
    %v3054 = vpop.xlane.xlu0 %3053
    %v3055 = vsel %vm2218, %v1879, -inf
    %3056 = vmax.xlane.f32.xlu0 %v3055
    %v3057 = vpop.xlane.xlu0 %3056
    %v3058 = vsel %vm2218, %v1991, -inf
    %3059 = vmax.xlane.f32.xlu0 %v3058
    %v3060 = vpop.xlane.xlu0 %3059
    %v3061 = vsel %vm2218, %v2103, -inf
    %3062 = vmax.xlane.f32.xlu0 %v3061
    %v3063 = vpop.xlane.xlu0 %3062
    %v3064 = vsel %vm2218, %v2215, -inf
    %3065 = vmax.xlane.f32.xlu0 %v3064
    %v3066 = vpop.xlane.xlu0 %3065
    %v3067 = vsel %vm2218, %v537, -inf
    %3068 = vmax.xlane.f32.xlu0 %v3067
    %v3069 = vpop.xlane.xlu0 %3068
    %v3070 = vsel %vm2218, %v649, -inf
    %3071 = vmax.xlane.f32.xlu0 %v3070
    %v3072 = vpop.xlane.xlu0 %3071
    %v3073 = vsel %vm2218, %v761, -inf
    %3074 = vmax.xlane.f32.xlu0 %v3073
    %v3075 = vpop.xlane.xlu0 %3074
    %v3076 = vsel %vm2218, %v873, -inf
    %3077 = vmax.xlane.f32.xlu0 %v3076
    %v3078 = vpop.xlane.xlu0 %3077
    %v3079 = vsel %vm2218, %v985, -inf
    %3080 = vmax.xlane.f32.xlu0 %v3079
    %v3081 = vpop.xlane.xlu0 %3080
    %v3082 = vsel %vm2218, %v1097, -inf
    %3083 = vmax.xlane.f32.xlu0 %v3082
    %v3084 = vpop.xlane.xlu0 %3083
    %v3085 = vsel %vm2218, %v1209, -inf
    %3086 = vmax.xlane.f32.xlu0 %v3085
    %v3087 = vpop.xlane.xlu0 %3086
    %v3088 = vsel %vm2218, %v1321, -inf
    %3089 = vmax.xlane.f32.xlu0 %v3088
    %v3090 = vpop.xlane.xlu0 %3089
    %v3091 = vsel %vm2218, %v1433, -inf
    %3092 = vmax.xlane.f32.xlu0 %v3091
    %v3093 = vpop.xlane.xlu0 %3092
    %v3094 = vsel %vm2218, %v1545, -inf
    %3095 = vmax.xlane.f32.xlu0 %v3094
    %v3096 = vpop.xlane.xlu0 %3095
    %v3097 = vsel %vm2218, %v1657, -inf
    %3098 = vmax.xlane.f32.xlu0 %v3097
    %v3099 = vpop.xlane.xlu0 %3098
    %v3100 = vsel %vm2218, %v1769, -inf
    %3101 = vmax.xlane.f32.xlu0 %v3100
    %v3102 = vpop.xlane.xlu0 %3101
    %v3103 = vsel %vm2218, %v1881, -inf
    %3104 = vmax.xlane.f32.xlu0 %v3103
    %v3105 = vpop.xlane.xlu0 %3104
    %v3106 = vsel %vm2218, %v1993, -inf
    %3107 = vmax.xlane.f32.xlu0 %v3106
    %v3108 = vpop.xlane.xlu0 %3107
    %v3109 = vsel %vm2218, %v2105, -inf
    %3110 = vmax.xlane.f32.xlu0 %v3109
    %v3111 = vpop.xlane.xlu0 %3110
    %v3112 = vsel %vm2218, %v2217, -inf
    %3113 = vmax.xlane.f32.xlu0 %v3112
    %v3114 = vpop.xlane.xlu0 %3113
    %v3243 = vlaneseq
    %v3244 = vand.u32 %v3243, 127
    %v3245 = vperm.slane %v2603, %v3244
    %v3246 = vadd.s32 %v3244, 4294967288
    %v3247 = vperm.slane %v2604, %v3246
    %vm3248 = vcmask 130112
    %v3249 = vsel %vm3248, %v3247, %v3245
    %v3250 = vadd.s32 %v3244, 4294967280
    %v3251 = vperm.slane %v2605, %v3250
    %vm3252 = vcmask 195712
    %v3253 = vsel %vm3252, %v3251, %v3249
    %v3254 = vadd.s32 %v3244, 4294967272
    %v3255 = vperm.slane %v2606, %v3254
    %vm3256 = vcmask 261312
    %v3257 = vsel %vm3256, %v3255, %v3253
    %v3258 = vadd.s32 %v3244, 4294967264
    %v3259 = vperm.slane %v2607, %v3258
    %vm3260 = vcmask 326912
    %v3261 = vsel %vm3260, %v3259, %v3257
    %v3262 = vadd.s32 %v3244, 4294967256
    %v3263 = vperm.slane %v2608, %v3262
    %vm3264 = vcmask 392512
    %v3265 = vsel %vm3264, %v3263, %v3261
    %v3266 = vadd.s32 %v3244, 4294967248
    %v3267 = vperm.slane %v2609, %v3266
    %vm3268 = vcmask 458112
    %v3269 = vsel %vm3268, %v3267, %v3265
    %v3270 = vadd.s32 %v3244, 4294967240
    %v3271 = vperm.slane %v2610, %v3270
    %vm3272 = vcmask 523712
    %v3273 = vsel %vm3272, %v3271, %v3269
    %v3274 = vadd.s32 %v3244, 4294967232
    %v3275 = vperm.slane %v2611, %v3274
    %vm3276 = vcmask 589312
    %v3277 = vsel %vm3276, %v3275, %v3273
    %v3278 = vadd.s32 %v3244, 4294967224
    %v3279 = vperm.slane %v2612, %v3278
    %vm3280 = vcmask 654912
    %v3281 = vsel %vm3280, %v3279, %v3277
    %v3282 = vadd.s32 %v3244, 4294967216
    %v3283 = vperm.slane %v2613, %v3282
    %vm3284 = vcmask 720512
    %v3285 = vsel %vm3284, %v3283, %v3281
    %v3286 = vadd.s32 %v3244, 4294967208
    %v3287 = vperm.slane %v2614, %v3286
    %vm3288 = vcmask 786112
    %v3289 = vsel %vm3288, %v3287, %v3285
    %v3290 = vadd.s32 %v3244, 4294967200
    %v3291 = vperm.slane %v2615, %v3290
    %vm3292 = vcmask 851712
    %v3293 = vsel %vm3292, %v3291, %v3289
    %v3294 = vadd.s32 %v3244, 4294967192
    %v3295 = vperm.slane %v2616, %v3294
    %vm3296 = vcmask 917312
    %v3297 = vsel %vm3296, %v3295, %v3293
    %v3298 = vadd.s32 %v3244, 4294967184
    %v3299 = vperm.slane %v2617, %v3298
    %vm3300 = vcmask 982912
    %v3301 = vsel %vm3300, %v3299, %v3297
    %v3302 = vadd.s32 %v3244, 4294967176
    %v3303 = vperm.slane %v2618, %v3302
    %vm3304 = vcmask 1048512
    %v3305 = vsel %vm3304, %v3303, %v3301
    %v3306 = vperm.slane %v2619, %v3244
    %v3307 = vperm.slane %v2620, %v3246
    %v3308 = vsel %vm3248, %v3307, %v3306
    %v3309 = vperm.slane %v2621, %v3250
    %v3310 = vsel %vm3252, %v3309, %v3308
    %v3311 = vperm.slane %v2622, %v3254
    %v3312 = vsel %vm3256, %v3311, %v3310
    %v3313 = vperm.slane %v2623, %v3258
    %v3314 = vsel %vm3260, %v3313, %v3312
    %v3315 = vperm.slane %v2624, %v3262
    %v3316 = vsel %vm3264, %v3315, %v3314
    %v3317 = vperm.slane %v2625, %v3266
    %v3318 = vsel %vm3268, %v3317, %v3316
    %v3319 = vperm.slane %v2626, %v3270
    %v3320 = vsel %vm3272, %v3319, %v3318
    %v3321 = vperm.slane %v2627, %v3274
    %v3322 = vsel %vm3276, %v3321, %v3320
    %v3323 = vperm.slane %v2628, %v3278
    %v3324 = vsel %vm3280, %v3323, %v3322
    %v3325 = vperm.slane %v2629, %v3282
    %v3326 = vsel %vm3284, %v3325, %v3324
    %v3327 = vperm.slane %v2630, %v3286
    %v3328 = vsel %vm3288, %v3327, %v3326
    %v3329 = vperm.slane %v2631, %v3290
    %v3330 = vsel %vm3292, %v3329, %v3328
    %v3331 = vperm.slane %v2632, %v3294
    %v3332 = vsel %vm3296, %v3331, %v3330
    %v3333 = vperm.slane %v2633, %v3298
    %v3334 = vsel %vm3300, %v3333, %v3332
    %v3335 = vperm.slane %v2634, %v3302
    %v3336 = vsel %vm3304, %v3335, %v3334
    %v3337 = vperm.slane %v2635, %v3244
    %v3338 = vperm.slane %v2636, %v3246
    %v3339 = vsel %vm3248, %v3338, %v3337
    %v3340 = vperm.slane %v2637, %v3250
    %v3341 = vsel %vm3252, %v3340, %v3339
    %v3342 = vperm.slane %v2638, %v3254
    %v3343 = vsel %vm3256, %v3342, %v3341
    %v3344 = vperm.slane %v2639, %v3258
    %v3345 = vsel %vm3260, %v3344, %v3343
    %v3346 = vperm.slane %v2640, %v3262
    %v3347 = vsel %vm3264, %v3346, %v3345
    %v3348 = vperm.slane %v2641, %v3266
    %v3349 = vsel %vm3268, %v3348, %v3347
    %v3350 = vperm.slane %v2642, %v3270
    %v3351 = vsel %vm3272, %v3350, %v3349
    %v3352 = vperm.slane %v2643, %v3274
    %v3353 = vsel %vm3276, %v3352, %v3351
    %v3354 = vperm.slane %v2644, %v3278
    %v3355 = vsel %vm3280, %v3354, %v3353
    %v3356 = vperm.slane %v2645, %v3282
    %v3357 = vsel %vm3284, %v3356, %v3355
    %v3358 = vperm.slane %v2646, %v3286
    %v3359 = vsel %vm3288, %v3358, %v3357
    %v3360 = vperm.slane %v2647, %v3290
    %v3361 = vsel %vm3292, %v3360, %v3359
    %v3362 = vperm.slane %v2648, %v3294
    %v3363 = vsel %vm3296, %v3362, %v3361
    %v3364 = vperm.slane %v2649, %v3298
    %v3365 = vsel %vm3300, %v3364, %v3363
    %v3366 = vperm.slane %v2650, %v3302
    %v3367 = vsel %vm3304, %v3366, %v3365
    %v3368 = vperm.slane %v2651, %v3244
    %v3369 = vperm.slane %v2652, %v3246
    %v3370 = vsel %vm3248, %v3369, %v3368
    %v3371 = vperm.slane %v2653, %v3250
    %v3372 = vsel %vm3252, %v3371, %v3370
    %v3373 = vperm.slane %v2654, %v3254
    %v3374 = vsel %vm3256, %v3373, %v3372
    %v3375 = vperm.slane %v2655, %v3258
    %v3376 = vsel %vm3260, %v3375, %v3374
    %v3377 = vperm.slane %v2656, %v3262
    %v3378 = vsel %vm3264, %v3377, %v3376
    %v3379 = vperm.slane %v2657, %v3266
    %v3380 = vsel %vm3268, %v3379, %v3378
    %v3381 = vperm.slane %v2658, %v3270
    %v3382 = vsel %vm3272, %v3381, %v3380
    %v3383 = vperm.slane %v2659, %v3274
    %v3384 = vsel %vm3276, %v3383, %v3382
    %v3385 = vperm.slane %v2660, %v3278
    %v3386 = vsel %vm3280, %v3385, %v3384
    %v3387 = vperm.slane %v2661, %v3282
    %v3388 = vsel %vm3284, %v3387, %v3386
    %v3389 = vperm.slane %v2662, %v3286
    %v3390 = vsel %vm3288, %v3389, %v3388
    %v3391 = vperm.slane %v2663, %v3290
    %v3392 = vsel %vm3292, %v3391, %v3390
    %v3393 = vperm.slane %v2664, %v3294
    %v3394 = vsel %vm3296, %v3393, %v3392
    %v3395 = vperm.slane %v2665, %v3298
    %v3396 = vsel %vm3300, %v3395, %v3394
    %v3397 = vperm.slane %v2666, %v3302
    %v3398 = vsel %vm3304, %v3397, %v3396
    %v3399 = vperm.slane %v2667, %v3244
    %v3400 = vperm.slane %v2668, %v3246
    %v3401 = vsel %vm3248, %v3400, %v3399
    %v3402 = vperm.slane %v2669, %v3250
    %v3403 = vsel %vm3252, %v3402, %v3401
    %v3404 = vperm.slane %v2670, %v3254
    %v3405 = vsel %vm3256, %v3404, %v3403
    %v3406 = vperm.slane %v2671, %v3258
    %v3407 = vsel %vm3260, %v3406, %v3405
    %v3408 = vperm.slane %v2672, %v3262
    %v3409 = vsel %vm3264, %v3408, %v3407
    %v3410 = vperm.slane %v2673, %v3266
    %v3411 = vsel %vm3268, %v3410, %v3409
    %v3412 = vperm.slane %v2674, %v3270
    %v3413 = vsel %vm3272, %v3412, %v3411
    %v3414 = vperm.slane %v2675, %v3274
    %v3415 = vsel %vm3276, %v3414, %v3413
    %v3416 = vperm.slane %v2676, %v3278
    %v3417 = vsel %vm3280, %v3416, %v3415
    %v3418 = vperm.slane %v2677, %v3282
    %v3419 = vsel %vm3284, %v3418, %v3417
    %v3420 = vperm.slane %v2678, %v3286
    %v3421 = vsel %vm3288, %v3420, %v3419
    %v3422 = vperm.slane %v2679, %v3290
    %v3423 = vsel %vm3292, %v3422, %v3421
    %v3424 = vperm.slane %v2680, %v3294
    %v3425 = vsel %vm3296, %v3424, %v3423
    %v3426 = vperm.slane %v2681, %v3298
    %v3427 = vsel %vm3300, %v3426, %v3425
    %v3428 = vperm.slane %v2682, %v3302
    %v3429 = vsel %vm3304, %v3428, %v3427
    %v3430 = vperm.slane %v2683, %v3244
    %v3431 = vperm.slane %v2684, %v3246
    %v3432 = vsel %vm3248, %v3431, %v3430
    %v3433 = vperm.slane %v2685, %v3250
    %v3434 = vsel %vm3252, %v3433, %v3432
    %v3435 = vperm.slane %v2686, %v3254
    %v3436 = vsel %vm3256, %v3435, %v3434
    %v3437 = vperm.slane %v2687, %v3258
    %v3438 = vsel %vm3260, %v3437, %v3436
    %v3439 = vperm.slane %v2688, %v3262
    %v3440 = vsel %vm3264, %v3439, %v3438
    %v3441 = vperm.slane %v2689, %v3266
    %v3442 = vsel %vm3268, %v3441, %v3440
    %v3443 = vperm.slane %v2690, %v3270
    %v3444 = vsel %vm3272, %v3443, %v3442
    %v3445 = vperm.slane %v2691, %v3274
    %v3446 = vsel %vm3276, %v3445, %v3444
    %v3447 = vperm.slane %v2692, %v3278
    %v3448 = vsel %vm3280, %v3447, %v3446
    %v3449 = vperm.slane %v2693, %v3282
    %v3450 = vsel %vm3284, %v3449, %v3448
    %v3451 = vperm.slane %v2694, %v3286
    %v3452 = vsel %vm3288, %v3451, %v3450
    %v3453 = vperm.slane %v2695, %v3290
    %v3454 = vsel %vm3292, %v3453, %v3452
    %v3455 = vperm.slane %v2696, %v3294
    %v3456 = vsel %vm3296, %v3455, %v3454
    %v3457 = vperm.slane %v2697, %v3298
    %v3458 = vsel %vm3300, %v3457, %v3456
    %v3459 = vperm.slane %v2698, %v3302
    %v3460 = vsel %vm3304, %v3459, %v3458
    %v3461 = vperm.slane %v2699, %v3244
    %v3462 = vperm.slane %v2700, %v3246
    %v3463 = vsel %vm3248, %v3462, %v3461
    %v3464 = vperm.slane %v2701, %v3250
    %v3465 = vsel %vm3252, %v3464, %v3463
    %v3466 = vperm.slane %v2702, %v3254
    %v3467 = vsel %vm3256, %v3466, %v3465
    %v3468 = vperm.slane %v2703, %v3258
    %v3469 = vsel %vm3260, %v3468, %v3467
    %v3470 = vperm.slane %v2704, %v3262
    %v3471 = vsel %vm3264, %v3470, %v3469
    %v3472 = vperm.slane %v2705, %v3266
    %v3473 = vsel %vm3268, %v3472, %v3471
    %v3474 = vperm.slane %v2706, %v3270
    %v3475 = vsel %vm3272, %v3474, %v3473
    %v3476 = vperm.slane %v2707, %v3274
    %v3477 = vsel %vm3276, %v3476, %v3475
    %v3478 = vperm.slane %v2708, %v3278
    %v3479 = vsel %vm3280, %v3478, %v3477
    %v3480 = vperm.slane %v2709, %v3282
    %v3481 = vsel %vm3284, %v3480, %v3479
    %v3482 = vperm.slane %v2710, %v3286
    %v3483 = vsel %vm3288, %v3482, %v3481
    %v3484 = vperm.slane %v2711, %v3290
    %v3485 = vsel %vm3292, %v3484, %v3483
    %v3486 = vperm.slane %v2712, %v3294
    %v3487 = vsel %vm3296, %v3486, %v3485
    %v3488 = vperm.slane %v2713, %v3298
    %v3489 = vsel %vm3300, %v3488, %v3487
    %v3490 = vperm.slane %v2714, %v3302
    %v3491 = vsel %vm3304, %v3490, %v3489
    %v3492 = vperm.slane %v2715, %v3244
    %v3493 = vperm.slane %v2716, %v3246
    %v3494 = vsel %vm3248, %v3493, %v3492
    %v3495 = vperm.slane %v2717, %v3250
    %v3496 = vsel %vm3252, %v3495, %v3494
    %v3497 = vperm.slane %v2718, %v3254
    %v3498 = vsel %vm3256, %v3497, %v3496
    %v3499 = vperm.slane %v2719, %v3258
    %v3500 = vsel %vm3260, %v3499, %v3498
    %v3501 = vperm.slane %v2720, %v3262
    %v3502 = vsel %vm3264, %v3501, %v3500
    %v3503 = vperm.slane %v2721, %v3266
    %v3504 = vsel %vm3268, %v3503, %v3502
    %v3505 = vperm.slane %v2722, %v3270
    %v3506 = vsel %vm3272, %v3505, %v3504
    %v3507 = vperm.slane %v2723, %v3274
    %v3508 = vsel %vm3276, %v3507, %v3506
    %v3509 = vperm.slane %v2724, %v3278
    %v3510 = vsel %vm3280, %v3509, %v3508
    %v3511 = vperm.slane %v2725, %v3282
    %v3512 = vsel %vm3284, %v3511, %v3510
    %v3513 = vperm.slane %v2726, %v3286
    %v3514 = vsel %vm3288, %v3513, %v3512
    %v3515 = vperm.slane %v2727, %v3290
    %v3516 = vsel %vm3292, %v3515, %v3514
    %v3517 = vperm.slane %v2728, %v3294
    %v3518 = vsel %vm3296, %v3517, %v3516
    %v3519 = vperm.slane %v2729, %v3298
    %v3520 = vsel %vm3300, %v3519, %v3518
    %v3521 = vperm.slane %v2730, %v3302
    %v3522 = vsel %vm3304, %v3521, %v3520
    %vm3523 = vcmask 1041409
    %v3524 = vsel %vm3523, %v3336, %v3305
    %vm3525 = vcmask 1042434
    %v3526 = vsel %vm3525, %v3367, %v3524
    %vm3527 = vcmask 1043459
    %v3528 = vsel %vm3527, %v3398, %v3526
    %vm3529 = vcmask 1044484
    %v3530 = vsel %vm3529, %v3429, %v3528
    %vm3531 = vcmask 1045509
    %v3532 = vsel %vm3531, %v3460, %v3530
    %vm3533 = vcmask 1046534
    %v3534 = vsel %vm3533, %v3491, %v3532
    %vm3535 = vcmask 1047559
    %v3536 = vsel %vm3535, %v3522, %v3534
    %v3666 = vperm.slane %v2733, %v3244
    %v3667 = vperm.slane %v2736, %v3246
    %v3668 = vsel %vm3248, %v3667, %v3666
    %v3669 = vperm.slane %v2739, %v3250
    %v3670 = vsel %vm3252, %v3669, %v3668
    %v3671 = vperm.slane %v2742, %v3254
    %v3672 = vsel %vm3256, %v3671, %v3670
    %v3673 = vperm.slane %v2745, %v3258
    %v3674 = vsel %vm3260, %v3673, %v3672
    %v3675 = vperm.slane %v2748, %v3262
    %v3676 = vsel %vm3264, %v3675, %v3674
    %v3677 = vperm.slane %v2751, %v3266
    %v3678 = vsel %vm3268, %v3677, %v3676
    %v3679 = vperm.slane %v2754, %v3270
    %v3680 = vsel %vm3272, %v3679, %v3678
    %v3681 = vperm.slane %v2757, %v3274
    %v3682 = vsel %vm3276, %v3681, %v3680
    %v3683 = vperm.slane %v2760, %v3278
    %v3684 = vsel %vm3280, %v3683, %v3682
    %v3685 = vperm.slane %v2763, %v3282
    %v3686 = vsel %vm3284, %v3685, %v3684
    %v3687 = vperm.slane %v2766, %v3286
    %v3688 = vsel %vm3288, %v3687, %v3686
    %v3689 = vperm.slane %v2769, %v3290
    %v3690 = vsel %vm3292, %v3689, %v3688
    %v3691 = vperm.slane %v2772, %v3294
    %v3692 = vsel %vm3296, %v3691, %v3690
    %v3693 = vperm.slane %v2775, %v3298
    %v3694 = vsel %vm3300, %v3693, %v3692
    %v3695 = vperm.slane %v2778, %v3302
    %v3696 = vsel %vm3304, %v3695, %v3694
    %v3697 = vperm.slane %v2781, %v3244
    %v3698 = vperm.slane %v2784, %v3246
    %v3699 = vsel %vm3248, %v3698, %v3697
    %v3700 = vperm.slane %v2787, %v3250
    %v3701 = vsel %vm3252, %v3700, %v3699
    %v3702 = vperm.slane %v2790, %v3254
    %v3703 = vsel %vm3256, %v3702, %v3701
    %v3704 = vperm.slane %v2793, %v3258
    %v3705 = vsel %vm3260, %v3704, %v3703
    %v3706 = vperm.slane %v2796, %v3262
    %v3707 = vsel %vm3264, %v3706, %v3705
    %v3708 = vperm.slane %v2799, %v3266
    %v3709 = vsel %vm3268, %v3708, %v3707
    %v3710 = vperm.slane %v2802, %v3270
    %v3711 = vsel %vm3272, %v3710, %v3709
    %v3712 = vperm.slane %v2805, %v3274
    %v3713 = vsel %vm3276, %v3712, %v3711
    %v3714 = vperm.slane %v2808, %v3278
    %v3715 = vsel %vm3280, %v3714, %v3713
    %v3716 = vperm.slane %v2811, %v3282
    %v3717 = vsel %vm3284, %v3716, %v3715
    %v3718 = vperm.slane %v2814, %v3286
    %v3719 = vsel %vm3288, %v3718, %v3717
    %v3720 = vperm.slane %v2817, %v3290
    %v3721 = vsel %vm3292, %v3720, %v3719
    %v3722 = vperm.slane %v2820, %v3294
    %v3723 = vsel %vm3296, %v3722, %v3721
    %v3724 = vperm.slane %v2823, %v3298
    %v3725 = vsel %vm3300, %v3724, %v3723
    %v3726 = vperm.slane %v2826, %v3302
    %v3727 = vsel %vm3304, %v3726, %v3725
    %v3728 = vperm.slane %v2829, %v3244
    %v3729 = vperm.slane %v2832, %v3246
    %v3730 = vsel %vm3248, %v3729, %v3728
    %v3731 = vperm.slane %v2835, %v3250
    %v3732 = vsel %vm3252, %v3731, %v3730
    %v3733 = vperm.slane %v2838, %v3254
    %v3734 = vsel %vm3256, %v3733, %v3732
    %v3735 = vperm.slane %v2841, %v3258
    %v3736 = vsel %vm3260, %v3735, %v3734
    %v3737 = vperm.slane %v2844, %v3262
    %v3738 = vsel %vm3264, %v3737, %v3736
    %v3739 = vperm.slane %v2847, %v3266
    %v3740 = vsel %vm3268, %v3739, %v3738
    %v3741 = vperm.slane %v2850, %v3270
    %v3742 = vsel %vm3272, %v3741, %v3740
    %v3743 = vperm.slane %v2853, %v3274
    %v3744 = vsel %vm3276, %v3743, %v3742
    %v3745 = vperm.slane %v2856, %v3278
    %v3746 = vsel %vm3280, %v3745, %v3744
    %v3747 = vperm.slane %v2859, %v3282
    %v3748 = vsel %vm3284, %v3747, %v3746
    %v3749 = vperm.slane %v2862, %v3286
    %v3750 = vsel %vm3288, %v3749, %v3748
    %v3751 = vperm.slane %v2865, %v3290
    %v3752 = vsel %vm3292, %v3751, %v3750
    %v3753 = vperm.slane %v2868, %v3294
    %v3754 = vsel %vm3296, %v3753, %v3752
    %v3755 = vperm.slane %v2871, %v3298
    %v3756 = vsel %vm3300, %v3755, %v3754
    %v3757 = vperm.slane %v2874, %v3302
    %v3758 = vsel %vm3304, %v3757, %v3756
    %v3759 = vperm.slane %v2877, %v3244
    %v3760 = vperm.slane %v2880, %v3246
    %v3761 = vsel %vm3248, %v3760, %v3759
    %v3762 = vperm.slane %v2883, %v3250
    %v3763 = vsel %vm3252, %v3762, %v3761
    %v3764 = vperm.slane %v2886, %v3254
    %v3765 = vsel %vm3256, %v3764, %v3763
    %v3766 = vperm.slane %v2889, %v3258
    %v3767 = vsel %vm3260, %v3766, %v3765
    %v3768 = vperm.slane %v2892, %v3262
    %v3769 = vsel %vm3264, %v3768, %v3767
    %v3770 = vperm.slane %v2895, %v3266
    %v3771 = vsel %vm3268, %v3770, %v3769
    %v3772 = vperm.slane %v2898, %v3270
    %v3773 = vsel %vm3272, %v3772, %v3771
    %v3774 = vperm.slane %v2901, %v3274
    %v3775 = vsel %vm3276, %v3774, %v3773
    %v3776 = vperm.slane %v2904, %v3278
    %v3777 = vsel %vm3280, %v3776, %v3775
    %v3778 = vperm.slane %v2907, %v3282
    %v3779 = vsel %vm3284, %v3778, %v3777
    %v3780 = vperm.slane %v2910, %v3286
    %v3781 = vsel %vm3288, %v3780, %v3779
    %v3782 = vperm.slane %v2913, %v3290
    %v3783 = vsel %vm3292, %v3782, %v3781
    %v3784 = vperm.slane %v2916, %v3294
    %v3785 = vsel %vm3296, %v3784, %v3783
    %v3786 = vperm.slane %v2919, %v3298
    %v3787 = vsel %vm3300, %v3786, %v3785
    %v3788 = vperm.slane %v2922, %v3302
    %v3789 = vsel %vm3304, %v3788, %v3787
    %v3790 = vperm.slane %v2925, %v3244
    %v3791 = vperm.slane %v2928, %v3246
    %v3792 = vsel %vm3248, %v3791, %v3790
    %v3793 = vperm.slane %v2931, %v3250
    %v3794 = vsel %vm3252, %v3793, %v3792
    %v3795 = vperm.slane %v2934, %v3254
    %v3796 = vsel %vm3256, %v3795, %v3794
    %v3797 = vperm.slane %v2937, %v3258
    %v3798 = vsel %vm3260, %v3797, %v3796
    %v3799 = vperm.slane %v2940, %v3262
    %v3800 = vsel %vm3264, %v3799, %v3798
    %v3801 = vperm.slane %v2943, %v3266
    %v3802 = vsel %vm3268, %v3801, %v3800
    %v3803 = vperm.slane %v2946, %v3270
    %v3804 = vsel %vm3272, %v3803, %v3802
    %v3805 = vperm.slane %v2949, %v3274
    %v3806 = vsel %vm3276, %v3805, %v3804
    %v3807 = vperm.slane %v2952, %v3278
    %v3808 = vsel %vm3280, %v3807, %v3806
    %v3809 = vperm.slane %v2955, %v3282
    %v3810 = vsel %vm3284, %v3809, %v3808
    %v3811 = vperm.slane %v2958, %v3286
    %v3812 = vsel %vm3288, %v3811, %v3810
    %v3813 = vperm.slane %v2961, %v3290
    %v3814 = vsel %vm3292, %v3813, %v3812
    %v3815 = vperm.slane %v2964, %v3294
    %v3816 = vsel %vm3296, %v3815, %v3814
    %v3817 = vperm.slane %v2967, %v3298
    %v3818 = vsel %vm3300, %v3817, %v3816
    %v3819 = vperm.slane %v2970, %v3302
    %v3820 = vsel %vm3304, %v3819, %v3818
    %v3821 = vperm.slane %v2973, %v3244
    %v3822 = vperm.slane %v2976, %v3246
    %v3823 = vsel %vm3248, %v3822, %v3821
    %v3824 = vperm.slane %v2979, %v3250
    %v3825 = vsel %vm3252, %v3824, %v3823
    %v3826 = vperm.slane %v2982, %v3254
    %v3827 = vsel %vm3256, %v3826, %v3825
    %v3828 = vperm.slane %v2985, %v3258
    %v3829 = vsel %vm3260, %v3828, %v3827
    %v3830 = vperm.slane %v2988, %v3262
    %v3831 = vsel %vm3264, %v3830, %v3829
    %v3832 = vperm.slane %v2991, %v3266
    %v3833 = vsel %vm3268, %v3832, %v3831
    %v3834 = vperm.slane %v2994, %v3270
    %v3835 = vsel %vm3272, %v3834, %v3833
    %v3836 = vperm.slane %v2997, %v3274
    %v3837 = vsel %vm3276, %v3836, %v3835
    %v3838 = vperm.slane %v3000, %v3278
    %v3839 = vsel %vm3280, %v3838, %v3837
    %v3840 = vperm.slane %v3003, %v3282
    %v3841 = vsel %vm3284, %v3840, %v3839
    %v3842 = vperm.slane %v3006, %v3286
    %v3843 = vsel %vm3288, %v3842, %v3841
    %v3844 = vperm.slane %v3009, %v3290
    %v3845 = vsel %vm3292, %v3844, %v3843
    %v3846 = vperm.slane %v3012, %v3294
    %v3847 = vsel %vm3296, %v3846, %v3845
    %v3848 = vperm.slane %v3015, %v3298
    %v3849 = vsel %vm3300, %v3848, %v3847
    %v3850 = vperm.slane %v3018, %v3302
    %v3851 = vsel %vm3304, %v3850, %v3849
    %v3852 = vperm.slane %v3021, %v3244
    %v3853 = vperm.slane %v3024, %v3246
    %v3854 = vsel %vm3248, %v3853, %v3852
    %v3855 = vperm.slane %v3027, %v3250
    %v3856 = vsel %vm3252, %v3855, %v3854
    %v3857 = vperm.slane %v3030, %v3254
    %v3858 = vsel %vm3256, %v3857, %v3856
    %v3859 = vperm.slane %v3033, %v3258
    %v3860 = vsel %vm3260, %v3859, %v3858
    %v3861 = vperm.slane %v3036, %v3262
    %v3862 = vsel %vm3264, %v3861, %v3860
    %v3863 = vperm.slane %v3039, %v3266
    %v3864 = vsel %vm3268, %v3863, %v3862
    %v3865 = vperm.slane %v3042, %v3270
    %v3866 = vsel %vm3272, %v3865, %v3864
    %v3867 = vperm.slane %v3045, %v3274
    %v3868 = vsel %vm3276, %v3867, %v3866
    %v3869 = vperm.slane %v3048, %v3278
    %v3870 = vsel %vm3280, %v3869, %v3868
    %v3871 = vperm.slane %v3051, %v3282
    %v3872 = vsel %vm3284, %v3871, %v3870
    %v3873 = vperm.slane %v3054, %v3286
    %v3874 = vsel %vm3288, %v3873, %v3872
    %v3875 = vperm.slane %v3057, %v3290
    %v3876 = vsel %vm3292, %v3875, %v3874
    %v3877 = vperm.slane %v3060, %v3294
    %v3878 = vsel %vm3296, %v3877, %v3876
    %v3879 = vperm.slane %v3063, %v3298
    %v3880 = vsel %vm3300, %v3879, %v3878
    %v3881 = vperm.slane %v3066, %v3302
    %v3882 = vsel %vm3304, %v3881, %v3880
    %v3883 = vperm.slane %v3069, %v3244
    %v3884 = vperm.slane %v3072, %v3246
    %v3885 = vsel %vm3248, %v3884, %v3883
    %v3886 = vperm.slane %v3075, %v3250
    %v3887 = vsel %vm3252, %v3886, %v3885
    %v3888 = vperm.slane %v3078, %v3254
    %v3889 = vsel %vm3256, %v3888, %v3887
    %v3890 = vperm.slane %v3081, %v3258
    %v3891 = vsel %vm3260, %v3890, %v3889
    %v3892 = vperm.slane %v3084, %v3262
    %v3893 = vsel %vm3264, %v3892, %v3891
    %v3894 = vperm.slane %v3087, %v3266
    %v3895 = vsel %vm3268, %v3894, %v3893
    %v3896 = vperm.slane %v3090, %v3270
    %v3897 = vsel %vm3272, %v3896, %v3895
    %v3898 = vperm.slane %v3093, %v3274
    %v3899 = vsel %vm3276, %v3898, %v3897
    %v3900 = vperm.slane %v3096, %v3278
    %v3901 = vsel %vm3280, %v3900, %v3899
    %v3902 = vperm.slane %v3099, %v3282
    %v3903 = vsel %vm3284, %v3902, %v3901
    %v3904 = vperm.slane %v3102, %v3286
    %v3905 = vsel %vm3288, %v3904, %v3903
    %v3906 = vperm.slane %v3105, %v3290
    %v3907 = vsel %vm3292, %v3906, %v3905
    %v3908 = vperm.slane %v3108, %v3294
    %v3909 = vsel %vm3296, %v3908, %v3907
    %v3910 = vperm.slane %v3111, %v3298
    %v3911 = vsel %vm3300, %v3910, %v3909
    %v3912 = vperm.slane %v3114, %v3302
    %v3913 = vsel %vm3304, %v3912, %v3911
    %v3914 = vsel %vm3523, %v3727, %v3696
    %v3915 = vsel %vm3525, %v3758, %v3914
    %v3916 = vsel %vm3527, %v3789, %v3915
    %v3917 = vsel %vm3529, %v3820, %v3916
    %v3918 = vsel %vm3531, %v3851, %v3917
    %v3919 = vsel %vm3533, %v3882, %v3918
    %v3920 = vsel %vm3535, %v3913, %v3919
    %v3922 = vsel %vm42, %v3536, %v3920
    %3923 = vst [vmem:[#allocation5] sm:$0xff] %v3922
    // Predicated region
    $region10: #{tpu_custom_call.1} parent=1 // pred_check
      _
    $region11: #{tpu_custom_call.1} parent=1 // pred_check_branch
      %3925 = sbr.rel (0) target = $region13
    $region12: #{tpu_custom_call.1} parent=1 // pred_region
      %3927 = vsyncadd [#allocation4], 0
      %s3929 = sshll.u32 [#allocation5], 4
      %s3930 = int_to_ptr.vmem [resolvable:$true] %s3929
      %s3931 = sshll.u32 %s1, 4
      %s3932 = int_to_ptr.hbm [resolvable:$true] %s3931
      %3934 = dma.vmem_to_hbm [thread:$0]  %s3930, 128, %s3932, [#allocation4]
    $region13: #{tpu_custom_call.1} parent=1 // pred_fallthru
      _
    // Predicated region
    $region14: #{tpu_custom_call.1} parent=1 // pred_check
      _
    $region15: #{tpu_custom_call.1} parent=1 // pred_check_branch
      %3936 = sbr.rel (0) target = $region17
    $region16: #{tpu_custom_call.1} parent=1 // pred_region
      %3938 = dma.done [#allocation4], 128
    $region17: #{tpu_custom_call.1} parent=1 // pred_fallthru
      _
    %3939 = vsyncpa [#allocation3], 1
    %3940 = vsyncpa [#allocation4], 1

</llo_original>
